<compile_context>
chip_gen: v5e
topology: v5e:2x2
jax: 0.10.0
libtpu: 0.0.40
codegen_flags: <defaults>
</compile_context>

<pallas_src>
import functools

import jax
import jax.numpy as jnp
from jax import lax
from jax.experimental import pallas as pl
from jax.experimental.pallas import tpu as pltpu

SLOPE = 0.01   # nn.LeakyReLU default negative_slope
EPS = 1e-5     # nn.BatchNorm2d default eps


# --------------------------------------------------------------------------
# Fused Bottleneck kernel: one image per grid step, activations as (C, M).
# --------------------------------------------------------------------------
def _bottleneck_kernel(x_ref,
                       w1_ref, s1_ref, b1_ref,
                       w2_ref, s2_ref, b2_ref,
                       w3_ref, s3_ref, b3_ref,
                       o_ref,
                       y1ext_ref,
                       *, H, W, dilation, planes, s_pad):
    d = dilation
    p = planes
    M = H * W
    S = s_pad                                # lane-aligned left/right pad width

    x = x_ref[...]                           # (Cin, M): conv1 input + residual

    # ---- conv1 (1x1) + bn1 + LeakyReLU (MXU, f32 accumulation) -----------
    a1 = jnp.dot(w1_ref[...], x, preferred_element_type=jnp.float32)
    a1 = a1 * s1_ref[...] + b1_ref[...]
    a1 = jnp.where(a1 >= 0, a1, SLOPE * a1)
    a1c = a1.astype(y1ext_ref.dtype)

    # ---- stage conv1 output with zeroed borders ---------------------------
    # Only the two S-wide borders are zeroed (they are never written and act
    # as the spatial zero-padding for row-shifted taps); the middle is fully
    # overwritten each step.  The main store is lane-aligned (S % 128 == 0).
    zb = jnp.zeros((p, S), y1ext_ref.dtype)
    y1ext_ref[:, :S] = zb
    y1ext_ref[:, S + M:] = zb
    y1ext_ref[:, S:S + M] = a1c

    # Column-border masks built in-kernel (no DMA'd oy/ox).  Row out-of-range
    # reads always land in the zeroed borders, so only the column wrap needs
    # masking, and only for dx != 1.
    col = lax.broadcasted_iota(jnp.int32, (1, M), 1) % W
    left_ok = (col >= d).astype(y1ext_ref.dtype)       # dx == 0 taps
    right_ok = (col < W - d).astype(y1ext_ref.dtype)   # dx == 2 taps

    # ---- conv2 (3x3, dilated): nine accumulating (p,p)@(p,M) matmuls -------
    # tap (dy, dx) of output (oy, ox) reads conv1 output at
    # (oy + (dy-1)*d, ox + (dx-1)*d), i.e. a constant flat shift of the staged
    # buffer.  f32 accumulator stays in vregs; no im2col scratch.
    acc2 = jnp.zeros((p, M), jnp.float32)
    for t in range(9):
        dy, dx = divmod(t, 3)
        if dy == 1 and dx == 1:
            tap = a1c                                      # center tap: reuse vregs
        else:
            sh = ((dy - 1) * W + (dx - 1)) * d
            tap = y1ext_ref[:, S + sh:S + sh + M]          # (p, M)
            if dx == 0:
                tap = tap * left_ok
            elif dx == 2:
                tap = tap * right_ok
        acc2 = acc2 + jnp.dot(w2_ref[t], tap,
                              preferred_element_type=jnp.float32)

    a2 = acc2 * s2_ref[...] + b2_ref[...]
    a2 = jnp.where(a2 >= 0, a2, SLOPE * a2)

    # ---- conv3 (1x1) + bn3 + residual + LeakyReLU --------------------------
    a3 = jnp.dot(w3_ref[...], a2.astype(w3_ref.dtype),
                 preferred_element_type=jnp.float32)
    a3 = a3 * s3_ref[...] + b3_ref[...] + x.astype(jnp.float32)
    o_ref[...] = jnp.where(a3 >= 0, a3, SLOPE * a3).astype(o_ref.dtype)


# --------------------------------------------------------------------------
# Wrapper: NCHW in / NCHW out, matching the PyTorch module.
# --------------------------------------------------------------------------
def _fold_bn(gamma, beta, mean, var):
    scale = gamma / jnp.sqrt(var + EPS)
    bias = beta - mean * scale
    return scale[:, None].astype(jnp.float32), bias[:, None].astype(jnp.float32)


def _pick_vmem_limit():
    cap = 128 * 1024 * 1024
    try:
        info = pltpu.get_tpu_info()
        cap = getattr(info, "vmem_capacity_bytes", cap) or cap
    except Exception:
        pass
    if cap >= 128 * 1024 * 1024:
        return 96 * 1024 * 1024       # v5e / v6e: 128 MiB physical VMEM
    return 48 * 1024 * 1024           # v7x-class: 64 MiB physical per TC


def bottleneck_forward(x_nchw, params, stride=1, dilation=1,
                       compute_dtype=jnp.float32):
    assert stride == 1, "downsample=None requires stride=1 for the residual add"
    N, Cin, H, W = x_nchw.shape
    M = H * W
    planes = params["conv1"].shape[0]
    Cout = params["conv3"].shape[0]
    assert Cout == Cin, "downsample=None requires inplanes == planes * expansion"
    cdtype = jnp.dtype(compute_dtype)

    s1, b1 = _fold_bn(*params["bn1"])
    s2, b2 = _fold_bn(*params["bn2"])
    s3, b3 = _fold_bn(*params["bn3"])

    # Weights in transposed-layout form (y = W @ x with x as (Cin, M)).
    w1 = params["conv1"][:, :, 0, 0].astype(cdtype)                    # (p, Cin)
    # conv2 (p, p, 3, 3) -> (9, p, p) with t = dy*3 + dx.
    w2 = jnp.transpose(params["conv2"], (2, 3, 0, 1)).reshape(
        9, planes, planes).astype(cdtype)
    w3 = params["conv3"][:, :, 0, 0].astype(cdtype)                    # (Cout, p)

    # NCHW -> (N, C, H*W) is a free reshape; M sits in the 128-lane dimension.
    x2 = x_nchw.reshape(N, Cin, M).astype(cdtype)

    # Lane-aligned pad width (>= the max |flat tap shift| d*(W+1)).
    s_pad = ((dilation * (W + 1) + 127) // 128) * 128

    kernel = functools.partial(_bottleneck_kernel, H=H, W=W,
                               dilation=dilation, planes=planes, s_pad=s_pad)

    img_map = lambda n: (n, 0, 0)
    rep2 = lambda n: (0, 0)
    rep3 = lambda n: (0, 0, 0)

    out = pl.pallas_call(
        kernel,
        out_shape=jax.ShapeDtypeStruct((N, Cout, M), cdtype),
        grid=(N,),
        in_specs=[
            pl.BlockSpec((None, Cin, M), img_map),         # x (conv1 in + residual)
            pl.BlockSpec((planes, Cin), rep2),             # w1
            pl.BlockSpec((planes, 1), rep2),               # s1
            pl.BlockSpec((planes, 1), rep2),               # b1
            pl.BlockSpec((9, planes, planes), rep3),       # w2 (9 taps)
            pl.BlockSpec((planes, 1), rep2),               # s2
            pl.BlockSpec((planes, 1), rep2),               # b2
            pl.BlockSpec((Cout, planes), rep2),            # w3
            pl.BlockSpec((Cout, 1), rep2),                 # s3
            pl.BlockSpec((Cout, 1), rep2),                 # b3
        ],
        out_specs=pl.BlockSpec((None, Cout, M), img_map),
        scratch_shapes=[
            pltpu.VMEM((planes, M + 2 * s_pad), cdtype),   # staged conv1 output
        ],
        compiler_params=pltpu.CompilerParams(
            dimension_semantics=("parallel",),             # v7x: 2 TCs over N
            vmem_limit_bytes=_pick_vmem_limit(),
        ),
        # Residual input and output have identical shape/dtype on both paths;
        # each grid step fully reads its x block before writing the same block.
        input_output_aliases={0: 0},
    )(x2, w1, s1, b1, w2, s2, b2, w3, s3, b3)

    return out.reshape(N, Cout, H, W)


# --------------------------------------------------------------------------
# Pure-JAX reference (mirrors the PyTorch module, eval-mode BN)
# --------------------------------------------------------------------------
def bottleneck_reference(x, params, stride=1, dilation=1):
    def bn(y, gamma, beta, mean, var):
        sh = (1, -1, 1, 1)
        return (y - mean.reshape(sh)) / jnp.sqrt(var.reshape(sh) + EPS) * \
            gamma.reshape(sh) + beta.reshape(sh)

    def lrelu(y):
        return jnp.where(y >= 0, y, SLOPE * y)

    dn = ("NCHW", "OIHW", "NCHW")
    y = lax.conv_general_dilated(x, params["conv1"], (1, 1), "VALID",
                                 dimension_numbers=dn)
    y = lrelu(bn(y, *params["bn1"]))
    y = lax.conv_general_dilated(y, params["conv2"], (stride, stride),
                                 [(dilation, dilation), (dilation, dilation)],
                                 rhs_dilation=(dilation, dilation),
                                 dimension_numbers=dn)
    y = lrelu(bn(y, *params["bn2"]))
    y = lax.conv_general_dilated(y, params["conv3"], (1, 1), "VALID",
                                 dimension_numbers=dn)
    y = bn(y, *params["bn3"])
    return lrelu(y + x)


# --------------------------------------------------------------------------
if __name__ == "__main__":
    inplanes, planes = 16, 4        # downsample=None => inplanes == planes*4
    N, H, W = 2, 16, 16

    key = jax.random.PRNGKey(0)
    keys = jax.random.split(key, 16)

    def bn_params(kg, kb, km, kv, c):
        return (jax.random.normal(kg, (c,), jnp.float32) * 0.1 + 1.0,
                jax.random.normal(kb, (c,), jnp.float32) * 0.1,
                jax.random.normal(km, (c,), jnp.float32) * 0.1,
                jax.random.uniform(kv, (c,), jnp.float32, 0.5, 1.5))

    params = {
        "conv1": jax.random.normal(keys[0], (planes, inplanes, 1, 1), jnp.float32) * 0.2,
        "bn1": bn_params(keys[1], keys[2], keys[3], keys[4], planes),
        "conv2": jax.random.normal(keys[5], (planes, planes, 3, 3), jnp.float32) * 0.2,
        "bn2": bn_params(keys[6], keys[7], keys[8], keys[9], planes),
        "conv3": jax.random.normal(keys[10], (planes * 4, planes, 1, 1), jnp.float32) * 0.2,
        "bn3": bn_params(keys[11], keys[12], keys[13], keys[14], planes * 4),
    }
    x = jax.random.normal(keys[15], (N, inplanes, H, W), jnp.float32)

    # f32 path (tight check), dilation 1 and 2 (padding=dilation, stride=1).
    for dilation in (1, 2):
        fwd = jax.jit(functools.partial(bottleneck_forward, params=params,
                                        stride=1, dilation=dilation,
                                        compute_dtype=jnp.float32))
        out = jax.block_until_ready(fwd(x))
        ref = bottleneck_reference(x, params, 1, dilation)
        assert out.shape == ref.shape == (N, planes * 4, H, W)
        err = jnp.max(jnp.abs(out - ref))
        assert jnp.allclose(out, ref, atol=2e-3, rtol=2e-3), \
            f"f32 path (dilation={dilation}) max err {err}"

    # bf16 path: bf16 reads AND bf16 writeback (halves HBM traffic on v6e/v7x,
    # and bf16 MXU operands avoid the multi-pass f32 MXU on v5e).  MXU still
    # accumulates in f32 and BN/residual epilogue is f32; conv2/conv3 consume
    # bf16-rounded activations, hence the loose tolerance.
    fwd16 = jax.jit(functools.partial(bottleneck_forward, params=params,
                                      stride=1, dilation=1,
                                      compute_dtype=jnp.bfloat16))
    out16 = jax.block_until_ready(fwd16(x))
    ref = bottleneck_reference(x, params, 1, 1)
    err16 = jnp.max(jnp.abs(out16.astype(jnp.float32) - ref))
    assert jnp.allclose(out16.astype(jnp.float32), ref, atol=1e-1, rtol=1e-1), \
        f"bf16 path max err {err16}"

    print("KERNEL_OK")
</pallas_src>

<mosaic_0001>
module attributes {stable_mosaic.version = 11 : i64} {
  func.func @_bottleneck_kernel(%arg0: i32, %arg1: memref<1x16x256xf32, #tpu.memory_space<vmem>>, %arg2: memref<4x16xf32, #tpu.memory_space<vmem>>, %arg3: memref<4x1xf32, #tpu.memory_space<vmem>>, %arg4: memref<4x1xf32, #tpu.memory_space<vmem>>, %arg5: memref<9x4x4xf32, #tpu.memory_space<vmem>>, %arg6: memref<4x1xf32, #tpu.memory_space<vmem>>, %arg7: memref<4x1xf32, #tpu.memory_space<vmem>>, %arg8: memref<16x4xf32, #tpu.memory_space<vmem>>, %arg9: memref<16x1xf32, #tpu.memory_space<vmem>>, %arg10: memref<16x1xf32, #tpu.memory_space<vmem>>, %arg11: memref<1x16x256xf32, #tpu.memory_space<vmem>>, %arg12: memref<4x512xf32, #tpu.memory_space<vmem>>) attributes {dimension_semantics = [#tpu.dimension_semantics<parallel>], iteration_bounds = array<i64: 2>, scalar_prefetch = 0 : i64, scratch_operands = 1 : i64, tpu.core_type = #tpu.core_type<tc>, window_params = [{transform_indices = @transform_0, window_bounds = array<i64: 1, 16, 256>}, {pipeline_mode = #tpu.pipeline_mode<synchronous>, transform_indices = @transform_1, window_bounds = array<i64: 4, 16>}, {pipeline_mode = #tpu.pipeline_mode<synchronous>, transform_indices = @transform_2, window_bounds = array<i64: 4, 1>}, {pipeline_mode = #tpu.pipeline_mode<synchronous>, transform_indices = @transform_3, window_bounds = array<i64: 4, 1>}, {pipeline_mode = #tpu.pipeline_mode<synchronous>, transform_indices = @transform_4, window_bounds = array<i64: 9, 4, 4>}, {pipeline_mode = #tpu.pipeline_mode<synchronous>, transform_indices = @transform_5, window_bounds = array<i64: 4, 1>}, {pipeline_mode = #tpu.pipeline_mode<synchronous>, transform_indices = @transform_6, window_bounds = array<i64: 4, 1>}, {pipeline_mode = #tpu.pipeline_mode<synchronous>, transform_indices = @transform_7, window_bounds = array<i64: 16, 4>}, {pipeline_mode = #tpu.pipeline_mode<synchronous>, transform_indices = @transform_8, window_bounds = array<i64: 16, 1>}, {pipeline_mode = #tpu.pipeline_mode<synchronous>, transform_indices = @transform_9, window_bounds = array<i64: 16, 1>}, {transform_indices = @transform_10, window_bounds = array<i64: 1, 16, 256>}]} {
    %c0 = arith.constant 0 : index
    %c0_0 = arith.constant 0 : index
    %c0_1 = arith.constant 0 : index
    %0 = vector.load %arg1[%c0, %c0_0, %c0_1] : memref<1x16x256xf32, #tpu.memory_space<vmem>>, vector<1x16x256xf32>
    %1 = vector.shape_cast %0 : vector<1x16x256xf32> to vector<16x256xf32>
    %c0_2 = arith.constant 0 : index
    %c0_3 = arith.constant 0 : index
    %2 = vector.load %arg2[%c0_2, %c0_3] : memref<4x16xf32, #tpu.memory_space<vmem>>, vector<4x16xf32>
    %cst = arith.constant dense<0.000000e+00> : vector<4x256xf32>
    %3 = tpu.matmul %2, %1, %cst {dimension_numbers = #tpu.dot_dimension_numbers<[1], [0], [0], [1], [0, 0, 1, 1], [], []>} : vector<4x16xf32>, vector<16x256xf32>, vector<4x256xf32> -> vector<4x256xf32>
    %c0_4 = arith.constant 0 : index
    %c0_5 = arith.constant 0 : index
    %4 = vector.load %arg3[%c0_4, %c0_5] : memref<4x1xf32, #tpu.memory_space<vmem>>, vector<4x1xf32>
    %5 = vector.broadcast %4 : vector<4x1xf32> to vector<4x256xf32>
    %6 = arith.mulf %3, %5 : vector<4x256xf32>
    %c0_6 = arith.constant 0 : index
    %c0_7 = arith.constant 0 : index
    %7 = vector.load %arg4[%c0_6, %c0_7] : memref<4x1xf32, #tpu.memory_space<vmem>>, vector<4x1xf32>
    %8 = vector.broadcast %7 : vector<4x1xf32> to vector<4x256xf32>
    %9 = arith.addf %6, %8 : vector<4x256xf32>
    %cst_8 = arith.constant 0.000000e+00 : f32
    %10 = vector.broadcast %cst_8 : f32 to vector<4x256xf32>
    %11 = arith.cmpf oge, %9, %10 : vector<4x256xf32>
    %cst_9 = arith.constant 0.00999999977 : f32
    %12 = vector.broadcast %cst_9 : f32 to vector<4x256xf32>
    %13 = arith.mulf %12, %9 : vector<4x256xf32>
    %14 = arith.select %11, %9, %13 : vector<4x256xi1>, vector<4x256xf32>
    %cst_10 = arith.constant 0.000000e+00 : f32
    %15 = vector.broadcast %cst_10 : f32 to vector<4x128xf32>
    %c0_11 = arith.constant 0 : index
    %c0_12 = arith.constant 0 : index
    %16 = vector.load %arg12[%c0_11, %c0_12] : memref<4x512xf32, #tpu.memory_space<vmem>>, vector<4x128xf32>
    tpu.vector_store %arg12[%c0_11, %c0_12], %15 {strides = array<i32>} : memref<4x512xf32, #tpu.memory_space<vmem>>, vector<4x128xf32>,
    %c0_13 = arith.constant 0 : index
    %c384 = arith.constant 384 : index
    %17 = vector.load %arg12[%c0_13, %c384] : memref<4x512xf32, #tpu.memory_space<vmem>>, vector<4x128xf32>
    tpu.vector_store %arg12[%c0_13, %c384], %15 {strides = array<i32>} : memref<4x512xf32, #tpu.memory_space<vmem>>, vector<4x128xf32>,
    %c0_14 = arith.constant 0 : index
    %c128 = arith.constant 128 : index
    %18 = vector.load %arg12[%c0_14, %c128] : memref<4x512xf32, #tpu.memory_space<vmem>>, vector<4x256xf32>
    tpu.vector_store %arg12[%c0_14, %c128], %14 {strides = array<i32>} : memref<4x512xf32, #tpu.memory_space<vmem>>, vector<4x256xf32>,
    %19 = tpu.iota {dimensions = array<i32: 1>} : vector<1x256xi32>
    %c16_i32 = arith.constant 16 : i32
    %c0_i32 = arith.constant 0 : i32
    %20 = arith.cmpi eq, %c16_i32, %c0_i32 : i32
    %c1_i32 = arith.constant 1 : i32
    %21 = arith.select %20, %c1_i32, %c16_i32 : i32
    %22 = vector.broadcast %21 : i32 to vector<1x256xi32>
    %23 = arith.remsi %19, %22 : vector<1x256xi32>
    %c0_i32_15 = arith.constant 0 : i32
    %24 = vector.broadcast %c0_i32_15 : i32 to vector<1x256xi32>
    %25 = arith.cmpi ne, %23, %24 : vector<1x256xi32>
    %c0_i32_16 = arith.constant 0 : i32
    %26 = vector.broadcast %c0_i32_16 : i32 to vector<1x256xi32>
    %27 = arith.cmpi slt, %23, %26 : vector<1x256xi32>
    %c0_i32_17 = arith.constant 0 : i32
    %28 = arith.cmpi slt, %21, %c0_i32_17 : i32
    %29 = vector.broadcast %28 : i1 to vector<1x256xi1>
    %30 = vector.broadcast %29 : vector<1x256xi1> to vector<1x256xi1>
    %31 = arith.xori %27, %30 : vector<1x256xi1>
    %32 = arith.andi %31, %25 : vector<1x256xi1>
    %33 = vector.broadcast %21 : i32 to vector<1x256xi32>
    %34 = arith.addi %23, %33 : vector<1x256xi32>
    %35 = arith.select %32, %34, %23 : vector<1x256xi1>, vector<1x256xi32>
    %c1_i32_18 = arith.constant 1 : i32
    %36 = vector.broadcast %c1_i32_18 : i32 to vector<1x256xi32>
    %37 = arith.cmpi sge, %35, %36 : vector<1x256xi32>
    %38 = arith.extui %37 : vector<1x256xi1> to vector<1x256xi32>
    %39 = arith.sitofp %38 : vector<1x256xi32> to vector<1x256xf32>
    %c15_i32 = arith.constant 15 : i32
    %40 = vector.broadcast %c15_i32 : i32 to vector<1x256xi32>
    %41 = arith.cmpi slt, %35, %40 : vector<1x256xi32>
    %42 = arith.extui %41 : vector<1x256xi1> to vector<1x256xi32>
    %43 = arith.sitofp %42 : vector<1x256xi32> to vector<1x256xf32>
    %cst_19 = arith.constant 0.000000e+00 : f32
    %44 = vector.broadcast %cst_19 : f32 to vector<4x256xf32>
    %c0_20 = arith.constant 0 : index
    %c111 = arith.constant 111 : index
    %45 = vector.load %arg12[%c0_20, %c111] : memref<4x512xf32, #tpu.memory_space<vmem>>, vector<4x256xf32>
    %46 = vector.broadcast %39 : vector<1x256xf32> to vector<4x256xf32>
    %47 = arith.mulf %45, %46 : vector<4x256xf32>
    %c0_21 = arith.constant 0 : index
    %c0_22 = arith.constant 0 : index
    %c0_23 = arith.constant 0 : index
    %48 = vector.load %arg5[%c0_21, %c0_22, %c0_23] : memref<9x4x4xf32, #tpu.memory_space<vmem>>, vector<1x4x4xf32>
    %49 = vector.shape_cast %48 : vector<1x4x4xf32> to vector<4x4xf32>
    %cst_24 = arith.constant dense<0.000000e+00> : vector<4x256xf32>
    %50 = tpu.matmul %49, %47, %cst_24 {dimension_numbers = #tpu.dot_dimension_numbers<[1], [0], [0], [1], [0, 0, 1, 1], [], []>} : vector<4x4xf32>, vector<4x256xf32>, vector<4x256xf32> -> vector<4x256xf32>
    %51 = arith.addf %44, %50 : vector<4x256xf32>
    %c0_25 = arith.constant 0 : index
    %c112 = arith.constant 112 : index
    %52 = vector.load %arg12[%c0_25, %c112] : memref<4x512xf32, #tpu.memory_space<vmem>>, vector<4x256xf32>
    %c1 = arith.constant 1 : index
    %c0_26 = arith.constant 0 : index
    %c0_27 = arith.constant 0 : index
    %53 = vector.load %arg5[%c1, %c0_26, %c0_27] : memref<9x4x4xf32, #tpu.memory_space<vmem>>, vector<1x4x4xf32>
    %54 = vector.shape_cast %53 : vector<1x4x4xf32> to vector<4x4xf32>
    %cst_28 = arith.constant dense<0.000000e+00> : vector<4x256xf32>
    %55 = tpu.matmul %54, %52, %cst_28 {dimension_numbers = #tpu.dot_dimension_numbers<[1], [0], [0], [1], [0, 0, 1, 1], [], []>} : vector<4x4xf32>, vector<4x256xf32>, vector<4x256xf32> -> vector<4x256xf32>
    %56 = arith.addf %51, %55 : vector<4x256xf32>
    %c0_29 = arith.constant 0 : index
    %c113 = arith.constant 113 : index
    %57 = vector.load %arg12[%c0_29, %c113] : memref<4x512xf32, #tpu.memory_space<vmem>>, vector<4x256xf32>
    %58 = vector.broadcast %43 : vector<1x256xf32> to vector<4x256xf32>
    %59 = arith.mulf %57, %58 : vector<4x256xf32>
    %c2 = arith.constant 2 : index
    %c0_30 = arith.constant 0 : index
    %c0_31 = arith.constant 0 : index
    %60 = vector.load %arg5[%c2, %c0_30, %c0_31] : memref<9x4x4xf32, #tpu.memory_space<vmem>>, vector<1x4x4xf32>
    %61 = vector.shape_cast %60 : vector<1x4x4xf32> to vector<4x4xf32>
    %cst_32 = arith.constant dense<0.000000e+00> : vector<4x256xf32>
    %62 = tpu.matmul %61, %59, %cst_32 {dimension_numbers = #tpu.dot_dimension_numbers<[1], [0], [0], [1], [0, 0, 1, 1], [], []>} : vector<4x4xf32>, vector<4x256xf32>, vector<4x256xf32> -> vector<4x256xf32>
    %63 = arith.addf %56, %62 : vector<4x256xf32>
    %c0_33 = arith.constant 0 : index
    %c127 = arith.constant 127 : index
    %64 = vector.load %arg12[%c0_33, %c127] : memref<4x512xf32, #tpu.memory_space<vmem>>, vector<4x256xf32>
    %65 = vector.broadcast %39 : vector<1x256xf32> to vector<4x256xf32>
    %66 = arith.mulf %64, %65 : vector<4x256xf32>
    %c3 = arith.constant 3 : index
    %c0_34 = arith.constant 0 : index
    %c0_35 = arith.constant 0 : index
    %67 = vector.load %arg5[%c3, %c0_34, %c0_35] : memref<9x4x4xf32, #tpu.memory_space<vmem>>, vector<1x4x4xf32>
    %68 = vector.shape_cast %67 : vector<1x4x4xf32> to vector<4x4xf32>
    %cst_36 = arith.constant dense<0.000000e+00> : vector<4x256xf32>
    %69 = tpu.matmul %68, %66, %cst_36 {dimension_numbers = #tpu.dot_dimension_numbers<[1], [0], [0], [1], [0, 0, 1, 1], [], []>} : vector<4x4xf32>, vector<4x256xf32>, vector<4x256xf32> -> vector<4x256xf32>
    %70 = arith.addf %63, %69 : vector<4x256xf32>
    %c4 = arith.constant 4 : index
    %c0_37 = arith.constant 0 : index
    %c0_38 = arith.constant 0 : index
    %71 = vector.load %arg5[%c4, %c0_37, %c0_38] : memref<9x4x4xf32, #tpu.memory_space<vmem>>, vector<1x4x4xf32>
    %72 = vector.shape_cast %71 : vector<1x4x4xf32> to vector<4x4xf32>
    %cst_39 = arith.constant dense<0.000000e+00> : vector<4x256xf32>
    %73 = tpu.matmul %72, %14, %cst_39 {dimension_numbers = #tpu.dot_dimension_numbers<[1], [0], [0], [1], [0, 0, 1, 1], [], []>} : vector<4x4xf32>, vector<4x256xf32>, vector<4x256xf32> -> vector<4x256xf32>
    %74 = arith.addf %70, %73 : vector<4x256xf32>
    %c0_40 = arith.constant 0 : index
    %c129 = arith.constant 129 : index
    %75 = vector.load %arg12[%c0_40, %c129] : memref<4x512xf32, #tpu.memory_space<vmem>>, vector<4x256xf32>
    %76 = vector.broadcast %43 : vector<1x256xf32> to vector<4x256xf32>
    %77 = arith.mulf %75, %76 : vector<4x256xf32>
    %c5 = arith.constant 5 : index
    %c0_41 = arith.constant 0 : index
    %c0_42 = arith.constant 0 : index
    %78 = vector.load %arg5[%c5, %c0_41, %c0_42] : memref<9x4x4xf32, #tpu.memory_space<vmem>>, vector<1x4x4xf32>
    %79 = vector.shape_cast %78 : vector<1x4x4xf32> to vector<4x4xf32>
    %cst_43 = arith.constant dense<0.000000e+00> : vector<4x256xf32>
    %80 = tpu.matmul %79, %77, %cst_43 {dimension_numbers = #tpu.dot_dimension_numbers<[1], [0], [0], [1], [0, 0, 1, 1], [], []>} : vector<4x4xf32>, vector<4x256xf32>, vector<4x256xf32> -> vector<4x256xf32>
    %81 = arith.addf %74, %80 : vector<4x256xf32>
    %c0_44 = arith.constant 0 : index
    %c143 = arith.constant 143 : index
    %82 = vector.load %arg12[%c0_44, %c143] : memref<4x512xf32, #tpu.memory_space<vmem>>, vector<4x256xf32>
    %83 = vector.broadcast %39 : vector<1x256xf32> to vector<4x256xf32>
    %84 = arith.mulf %82, %83 : vector<4x256xf32>
    %c6 = arith.constant 6 : index
    %c0_45 = arith.constant 0 : index
    %c0_46 = arith.constant 0 : index
    %85 = vector.load %arg5[%c6, %c0_45, %c0_46] : memref<9x4x4xf32, #tpu.memory_space<vmem>>, vector<1x4x4xf32>
    %86 = vector.shape_cast %85 : vector<1x4x4xf32> to vector<4x4xf32>
    %cst_47 = arith.constant dense<0.000000e+00> : vector<4x256xf32>
    %87 = tpu.matmul %86, %84, %cst_47 {dimension_numbers = #tpu.dot_dimension_numbers<[1], [0], [0], [1], [0, 0, 1, 1], [], []>} : vector<4x4xf32>, vector<4x256xf32>, vector<4x256xf32> -> vector<4x256xf32>
    %88 = arith.addf %81, %87 : vector<4x256xf32>
    %c0_48 = arith.constant 0 : index
    %c144 = arith.constant 144 : index
    %89 = vector.load %arg12[%c0_48, %c144] : memref<4x512xf32, #tpu.memory_space<vmem>>, vector<4x256xf32>
    %c7 = arith.constant 7 : index
    %c0_49 = arith.constant 0 : index
    %c0_50 = arith.constant 0 : index
    %90 = vector.load %arg5[%c7, %c0_49, %c0_50] : memref<9x4x4xf32, #tpu.memory_space<vmem>>, vector<1x4x4xf32>
    %91 = vector.shape_cast %90 : vector<1x4x4xf32> to vector<4x4xf32>
    %cst_51 = arith.constant dense<0.000000e+00> : vector<4x256xf32>
    %92 = tpu.matmul %91, %89, %cst_51 {dimension_numbers = #tpu.dot_dimension_numbers<[1], [0], [0], [1], [0, 0, 1, 1], [], []>} : vector<4x4xf32>, vector<4x256xf32>, vector<4x256xf32> -> vector<4x256xf32>
    %93 = arith.addf %88, %92 : vector<4x256xf32>
    %c0_52 = arith.constant 0 : index
    %c145 = arith.constant 145 : index
    %94 = vector.load %arg12[%c0_52, %c145] : memref<4x512xf32, #tpu.memory_space<vmem>>, vector<4x256xf32>
    %95 = vector.broadcast %43 : vector<1x256xf32> to vector<4x256xf32>
    %96 = arith.mulf %94, %95 : vector<4x256xf32>
    %c8 = arith.constant 8 : index
    %c0_53 = arith.constant 0 : index
    %c0_54 = arith.constant 0 : index
    %97 = vector.load %arg5[%c8, %c0_53, %c0_54] : memref<9x4x4xf32, #tpu.memory_space<vmem>>, vector<1x4x4xf32>
    %98 = vector.shape_cast %97 : vector<1x4x4xf32> to vector<4x4xf32>
    %cst_55 = arith.constant dense<0.000000e+00> : vector<4x256xf32>
    %99 = tpu.matmul %98, %96, %cst_55 {dimension_numbers = #tpu.dot_dimension_numbers<[1], [0], [0], [1], [0, 0, 1, 1], [], []>} : vector<4x4xf32>, vector<4x256xf32>, vector<4x256xf32> -> vector<4x256xf32>
    %100 = arith.addf %93, %99 : vector<4x256xf32>
    %c0_56 = arith.constant 0 : index
    %c0_57 = arith.constant 0 : index
    %101 = vector.load %arg6[%c0_56, %c0_57] : memref<4x1xf32, #tpu.memory_space<vmem>>, vector<4x1xf32>
    %102 = vector.broadcast %101 : vector<4x1xf32> to vector<4x256xf32>
    %103 = arith.mulf %100, %102 : vector<4x256xf32>
    %c0_58 = arith.constant 0 : index
    %c0_59 = arith.constant 0 : index
    %104 = vector.load %arg7[%c0_58, %c0_59] : memref<4x1xf32, #tpu.memory_space<vmem>>, vector<4x1xf32>
    %105 = vector.broadcast %104 : vector<4x1xf32> to vector<4x256xf32>
    %106 = arith.addf %103, %105 : vector<4x256xf32>
    %cst_60 = arith.constant 0.000000e+00 : f32
    %107 = vector.broadcast %cst_60 : f32 to vector<4x256xf32>
    %108 = arith.cmpf oge, %106, %107 : vector<4x256xf32>
    %cst_61 = arith.constant 0.00999999977 : f32
    %109 = vector.broadcast %cst_61 : f32 to vector<4x256xf32>
    %110 = arith.mulf %109, %106 : vector<4x256xf32>
    %111 = arith.select %108, %106, %110 : vector<4x256xi1>, vector<4x256xf32>
    %c0_62 = arith.constant 0 : index
    %c0_63 = arith.constant 0 : index
    %112 = vector.load %arg8[%c0_62, %c0_63] : memref<16x4xf32, #tpu.memory_space<vmem>>, vector<16x4xf32>
    %cst_64 = arith.constant dense<0.000000e+00> : vector<16x256xf32>
    %113 = tpu.matmul %112, %111, %cst_64 {dimension_numbers = #tpu.dot_dimension_numbers<[1], [0], [0], [1], [0, 0, 1, 1], [], []>} : vector<16x4xf32>, vector<4x256xf32>, vector<16x256xf32> -> vector<16x256xf32>
    %c0_65 = arith.constant 0 : index
    %c0_66 = arith.constant 0 : index
    %114 = vector.load %arg9[%c0_65, %c0_66] : memref<16x1xf32, #tpu.memory_space<vmem>>, vector<16x1xf32>
    %115 = vector.broadcast %114 : vector<16x1xf32> to vector<16x256xf32>
    %116 = arith.mulf %113, %115 : vector<16x256xf32>
    %c0_67 = arith.constant 0 : index
    %c0_68 = arith.constant 0 : index
    %117 = vector.load %arg10[%c0_67, %c0_68] : memref<16x1xf32, #tpu.memory_space<vmem>>, vector<16x1xf32>
    %118 = vector.broadcast %117 : vector<16x1xf32> to vector<16x256xf32>
    %119 = arith.addf %116, %118 : vector<16x256xf32>
    %120 = arith.addf %119, %1 : vector<16x256xf32>
    %cst_69 = arith.constant 0.000000e+00 : f32
    %121 = vector.broadcast %cst_69 : f32 to vector<16x256xf32>
    %122 = arith.cmpf oge, %120, %121 : vector<16x256xf32>
    %cst_70 = arith.constant 0.00999999977 : f32
    %123 = vector.broadcast %cst_70 : f32 to vector<16x256xf32>
    %124 = arith.mulf %123, %120 : vector<16x256xf32>
    %125 = arith.select %122, %120, %124 : vector<16x256xi1>, vector<16x256xf32>
    %c0_71 = arith.constant 0 : index
    %c0_72 = arith.constant 0 : index
    %c0_73 = arith.constant 0 : index
    %126 = vector.load %arg11[%c0_71, %c0_72, %c0_73] : memref<1x16x256xf32, #tpu.memory_space<vmem>>, vector<1x16x256xf32>
    %127 = vector.shape_cast %126 : vector<1x16x256xf32> to vector<16x256xf32>
    %128 = vector.shape_cast %125 : vector<16x256xf32> to vector<1x16x256xf32>
    tpu.vector_store %arg11[%c0_71, %c0_72, %c0_73], %128 {strides = array<i32>} : memref<1x16x256xf32, #tpu.memory_space<vmem>>, vector<1x16x256xf32>,
    return
  }
  func.func @transform_0(%arg0: i32) -> (i32, i32, i32) {
    %c0_i32 = arith.constant 0 : i32
    %c0_i32_0 = arith.constant 0 : i32
    %c0_i32_1 = arith.constant 0 : i32
    return %arg0, %c0_i32, %c0_i32_0 : i32, i32, i32
  }
  func.func @transform_1(%arg0: i32) -> (i32, i32) {
    %c0_i32 = arith.constant 0 : i32
    %c0_i32_0 = arith.constant 0 : i32
    %c0_i32_1 = arith.constant 0 : i32
    return %c0_i32, %c0_i32_0 : i32, i32
  }
  func.func @transform_2(%arg0: i32) -> (i32, i32) {
    %c0_i32 = arith.constant 0 : i32
    %c0_i32_0 = arith.constant 0 : i32
    %c0_i32_1 = arith.constant 0 : i32
    return %c0_i32, %c0_i32_0 : i32, i32
  }
  func.func @transform_3(%arg0: i32) -> (i32, i32) {
    %c0_i32 = arith.constant 0 : i32
    %c0_i32_0 = arith.constant 0 : i32
    %c0_i32_1 = arith.constant 0 : i32
    return %c0_i32, %c0_i32_0 : i32, i32
  }
  func.func @transform_4(%arg0: i32) -> (i32, i32, i32) {
    %c0_i32 = arith.constant 0 : i32
    %c0_i32_0 = arith.constant 0 : i32
    %c0_i32_1 = arith.constant 0 : i32
    %c0_i32_2 = arith.constant 0 : i32
    return %c0_i32, %c0_i32_0, %c0_i32_1 : i32, i32, i32
  }
  func.func @transform_5(%arg0: i32) -> (i32, i32) {
    %c0_i32 = arith.constant 0 : i32
    %c0_i32_0 = arith.constant 0 : i32
    %c0_i32_1 = arith.constant 0 : i32
    return %c0_i32, %c0_i32_0 : i32, i32
  }
  func.func @transform_6(%arg0: i32) -> (i32, i32) {
    %c0_i32 = arith.constant 0 : i32
    %c0_i32_0 = arith.constant 0 : i32
    %c0_i32_1 = arith.constant 0 : i32
    return %c0_i32, %c0_i32_0 : i32, i32
  }
  func.func @transform_7(%arg0: i32) -> (i32, i32) {
    %c0_i32 = arith.constant 0 : i32
    %c0_i32_0 = arith.constant 0 : i32
    %c0_i32_1 = arith.constant 0 : i32
    return %c0_i32, %c0_i32_0 : i32, i32
  }
  func.func @transform_8(%arg0: i32) -> (i32, i32) {
    %c0_i32 = arith.constant 0 : i32
    %c0_i32_0 = arith.constant 0 : i32
    %c0_i32_1 = arith.constant 0 : i32
    return %c0_i32, %c0_i32_0 : i32, i32
  }
  func.func @transform_9(%arg0: i32) -> (i32, i32) {
    %c0_i32 = arith.constant 0 : i32
    %c0_i32_0 = arith.constant 0 : i32
    %c0_i32_1 = arith.constant 0 : i32
    return %c0_i32, %c0_i32_0 : i32, i32
  }
  func.func @transform_10(%arg0: i32) -> (i32, i32, i32) {
    %c0_i32 = arith.constant 0 : i32
    %c0_i32_0 = arith.constant 0 : i32
    %c0_i32_1 = arith.constant 0 : i32
    return %arg0, %c0_i32, %c0_i32_0 : i32, i32, i32
  }
}

</mosaic_0001>

<llo_original>
// kernel: bottleneck_forward.1
$region0: #{bottleneck_forward.1}
  #allocation0 [shape = 'u32[]', space=smem, size = 0x4, offset = 0x4, fixed_abs, tag = 'smem constant byte address 0x4 - core index']
  #allocation1 [shape = 'u32[72,128]{1,0:T(1,128)}', space=vmem, size = 0x9000, scoped, tag = 'internal scratch']
  #allocation2 [shape = 'f32[4,512]{1,0:T(4,128)}', space=vmem, size = 0x2000, scoped, tag = 'scratch operand']
  %s0 = inlined_call_operand.vmem [shape: f32[2,16,256], index: 0, kind: input, shape index: {}, may-alias: {0,10}]
  %s1 = inlined_call_operand.vmem [shape: f32[4,16], index: 1, kind: input, shape index: {}]
  %s2 = inlined_call_operand.vmem [shape: f32[4,1], index: 2, kind: input, shape index: {}]
  %s3 = inlined_call_operand.vmem [shape: f32[4,1], index: 3, kind: input, shape index: {}]
  %s4 = inlined_call_operand.vmem [shape: f32[9,4,4], index: 4, kind: input, shape index: {}]
  %s5 = inlined_call_operand.vmem [shape: f32[4,1], index: 5, kind: input, shape index: {}]
  %s6 = inlined_call_operand.vmem [shape: f32[4,1], index: 6, kind: input, shape index: {}]
  %s7 = inlined_call_operand.vmem [shape: f32[16,4], index: 7, kind: input, shape index: {}]
  %s8 = inlined_call_operand.vmem [shape: f32[16,1], index: 8, kind: input, shape index: {}]
  %s9 = inlined_call_operand.vmem [shape: f32[16,1], index: 9, kind: input, shape index: {}]
  %s10 = inlined_call_operand.vmem [shape: f32[2,16,256], index: 10, kind: output, shape index: {}, may-alias: {0,10}]
  %s11 = sld [smem:[#allocation0]]
  $region73: #{bottleneck_forward.1} parent=0
    _
  %s13 = ssub.s32 1, %s11
  %s14 = scalar_select 0, %s13, %s11
  loop: start=0, step=1, limit=4
  $region2: #{bottleneck_forward.1} parent=0 // loop_pre_header
    _
  $region3: #{bottleneck_forward.1} parent=0 // loop_header
    %s16 = sphi 0, %s20
    %p17 = scmp.ge.s32.totalorder %s16, 4
    %s26 = sphi 0, %s28
    %s29 = sphi 0, %s26
    %s30 = sphi 0, %s29
    %s46 = sphi 0, %s30
    %s50 = sphi 0, %s50
    %s52 = sphi 0, %s50
    %s53 = sphi 0, %s52
    %s67 = sphi 0, %s53
    %s71 = sphi 0, %s71
    %s73 = sphi 0, %s71
    %s74 = sphi 0, %s73
    %s88 = sphi 0, %s74
    %s92 = sphi 0, %s92
    %s94 = sphi 0, %s92
    %s95 = sphi 0, %s94
    %s109 = sphi 0, %s95
    %s113 = sphi 0, %s113
    %s115 = sphi 0, %s113
    %s116 = sphi 0, %s115
    %s130 = sphi 0, %s116
    %s134 = sphi 0, %s134
    %s136 = sphi 0, %s134
    %s137 = sphi 0, %s136
    %s151 = sphi 0, %s137
    %s155 = sphi 0, %s155
    %s157 = sphi 0, %s155
    %s158 = sphi 0, %s157
    %s172 = sphi 0, %s158
    %s176 = sphi 0, %s176
    %s178 = sphi 0, %s176
    %s179 = sphi 0, %s178
    %s193 = sphi 0, %s179
    %s197 = sphi 0, %s197
    %s199 = sphi 0, %s197
    %s200 = sphi 0, %s199
    %s214 = sphi 0, %s200
    %s218 = sphi 0, %s218
    %s220 = sphi 0, %s218
    %s221 = sphi 0, %s220
    %s235 = sphi 0, %s221
    %s241 = sphi 0, %s243
    %s244 = sphi 0, %s241
    %s245 = sphi 0, %s244
    %s261 = sphi 0, %s245
  $region4: #{bottleneck_forward.1} parent=0 // loop_header_branch
    %19 = sbr.rel (%p17) target = $region8
  $region5: #{bottleneck_forward.1} parent=0 // loop_body
    %s21 = ssub.s32 %s16, 1
    %s22 = ssub.s32 %s16, 2
    %s23 = sadd.s32 %s16, 1
    %s24 = ssub.s32 %s16, %s23
    %p25 = scmp.eq.s32.totalorder %s24, 0
    %s27 = sadd.s32 %s26, 1
    %s28 = scalar_select %p25, %s26, %s27
    %p31 = pneg %p25
    %p32 = scmp.eq.s32.totalorder %s16, 1
    %p33 = por %p31, %p32
    %p34 = scmp.ne.s32.totalorder %s26, %s29
    %p35 = scmp.eq.s32.totalorder %s16, 0
    %p36 = por %p34, %p35
    %p37 = scmp.ne.s32.totalorder %s26, %s29
    %p38 = scmp.eq.s32.totalorder %s21, 1
    %p39 = por %p37, %p38
    %p40 = scmp.ne.s32.totalorder %s29, %s30
    %p41 = scmp.eq.s32.totalorder %s21, 0
    %p42 = por %p40, %p41
    %p43 = scmp.ne.s32.totalorder %s29, %s30
    %p44 = scmp.eq.s32.totalorder %s22, 1
    %p45 = por %p43, %p44
    %p47 = scmp.ne.s32.totalorder %s30, %s46
    %p48 = scmp.eq.s32.totalorder %s22, 0
    %p49 = por %p47, %p48
    %s51 = sadd.s32 %s50, 1
    %p54 = scmp.eq.s32.totalorder %s16, 1
    %p55 = scmp.ne.s32.totalorder %s50, %s52
    %p56 = scmp.eq.s32.totalorder %s16, 0
    %p57 = por %p55, %p56
    %p58 = scmp.ne.s32.totalorder %s50, %s52
    %p59 = scmp.eq.s32.totalorder %s21, 1
    %p60 = por %p58, %p59
    %p61 = scmp.ne.s32.totalorder %s52, %s53
    %p62 = scmp.eq.s32.totalorder %s21, 0
    %p63 = por %p61, %p62
    %p64 = scmp.ne.s32.totalorder %s52, %s53
    %p65 = scmp.eq.s32.totalorder %s22, 1
    %p66 = por %p64, %p65
    %p68 = scmp.ne.s32.totalorder %s53, %s67
    %p69 = scmp.eq.s32.totalorder %s22, 0
    %p70 = por %p68, %p69
    %s72 = sadd.s32 %s71, 1
    %p75 = scmp.eq.s32.totalorder %s16, 1
    %p76 = scmp.ne.s32.totalorder %s71, %s73
    %p77 = scmp.eq.s32.totalorder %s16, 0
    %p78 = por %p76, %p77
    %p79 = scmp.ne.s32.totalorder %s71, %s73
    %p80 = scmp.eq.s32.totalorder %s21, 1
    %p81 = por %p79, %p80
    %p82 = scmp.ne.s32.totalorder %s73, %s74
    %p83 = scmp.eq.s32.totalorder %s21, 0
    %p84 = por %p82, %p83
    %p85 = scmp.ne.s32.totalorder %s73, %s74
    %p86 = scmp.eq.s32.totalorder %s22, 1
    %p87 = por %p85, %p86
    %p89 = scmp.ne.s32.totalorder %s74, %s88
    %p90 = scmp.eq.s32.totalorder %s22, 0
    %p91 = por %p89, %p90
    %s93 = sadd.s32 %s92, 1
    %p96 = scmp.eq.s32.totalorder %s16, 1
    %p97 = scmp.ne.s32.totalorder %s92, %s94
    %p98 = scmp.eq.s32.totalorder %s16, 0
    %p99 = por %p97, %p98
    %p100 = scmp.ne.s32.totalorder %s92, %s94
    %p101 = scmp.eq.s32.totalorder %s21, 1
    %p102 = por %p100, %p101
    %p103 = scmp.ne.s32.totalorder %s94, %s95
    %p104 = scmp.eq.s32.totalorder %s21, 0
    %p105 = por %p103, %p104
    %p106 = scmp.ne.s32.totalorder %s94, %s95
    %p107 = scmp.eq.s32.totalorder %s22, 1
    %p108 = por %p106, %p107
    %p110 = scmp.ne.s32.totalorder %s95, %s109
    %p111 = scmp.eq.s32.totalorder %s22, 0
    %p112 = por %p110, %p111
    %s114 = sadd.s32 %s113, 1
    %p117 = scmp.eq.s32.totalorder %s16, 1
    %p118 = scmp.ne.s32.totalorder %s113, %s115
    %p119 = scmp.eq.s32.totalorder %s16, 0
    %p120 = por %p118, %p119
    %p121 = scmp.ne.s32.totalorder %s113, %s115
    %p122 = scmp.eq.s32.totalorder %s21, 1
    %p123 = por %p121, %p122
    %p124 = scmp.ne.s32.totalorder %s115, %s116
    %p125 = scmp.eq.s32.totalorder %s21, 0
    %p126 = por %p124, %p125
    %p127 = scmp.ne.s32.totalorder %s115, %s116
    %p128 = scmp.eq.s32.totalorder %s22, 1
    %p129 = por %p127, %p128
    %p131 = scmp.ne.s32.totalorder %s116, %s130
    %p132 = scmp.eq.s32.totalorder %s22, 0
    %p133 = por %p131, %p132
    %s135 = sadd.s32 %s134, 1
    %p138 = scmp.eq.s32.totalorder %s16, 1
    %p139 = scmp.ne.s32.totalorder %s134, %s136
    %p140 = scmp.eq.s32.totalorder %s16, 0
    %p141 = por %p139, %p140
    %p142 = scmp.ne.s32.totalorder %s134, %s136
    %p143 = scmp.eq.s32.totalorder %s21, 1
    %p144 = por %p142, %p143
    %p145 = scmp.ne.s32.totalorder %s136, %s137
    %p146 = scmp.eq.s32.totalorder %s21, 0
    %p147 = por %p145, %p146
    %p148 = scmp.ne.s32.totalorder %s136, %s137
    %p149 = scmp.eq.s32.totalorder %s22, 1
    %p150 = por %p148, %p149
    %p152 = scmp.ne.s32.totalorder %s137, %s151
    %p153 = scmp.eq.s32.totalorder %s22, 0
    %p154 = por %p152, %p153
    %s156 = sadd.s32 %s155, 1
    %p159 = scmp.eq.s32.totalorder %s16, 1
    %p160 = scmp.ne.s32.totalorder %s155, %s157
    %p161 = scmp.eq.s32.totalorder %s16, 0
    %p162 = por %p160, %p161
    %p163 = scmp.ne.s32.totalorder %s155, %s157
    %p164 = scmp.eq.s32.totalorder %s21, 1
    %p165 = por %p163, %p164
    %p166 = scmp.ne.s32.totalorder %s157, %s158
    %p167 = scmp.eq.s32.totalorder %s21, 0
    %p168 = por %p166, %p167
    %p169 = scmp.ne.s32.totalorder %s157, %s158
    %p170 = scmp.eq.s32.totalorder %s22, 1
    %p171 = por %p169, %p170
    %p173 = scmp.ne.s32.totalorder %s158, %s172
    %p174 = scmp.eq.s32.totalorder %s22, 0
    %p175 = por %p173, %p174
    %s177 = sadd.s32 %s176, 1
    %p180 = scmp.eq.s32.totalorder %s16, 1
    %p181 = scmp.ne.s32.totalorder %s176, %s178
    %p182 = scmp.eq.s32.totalorder %s16, 0
    %p183 = por %p181, %p182
    %p184 = scmp.ne.s32.totalorder %s176, %s178
    %p185 = scmp.eq.s32.totalorder %s21, 1
    %p186 = por %p184, %p185
    %p187 = scmp.ne.s32.totalorder %s178, %s179
    %p188 = scmp.eq.s32.totalorder %s21, 0
    %p189 = por %p187, %p188
    %p190 = scmp.ne.s32.totalorder %s178, %s179
    %p191 = scmp.eq.s32.totalorder %s22, 1
    %p192 = por %p190, %p191
    %p194 = scmp.ne.s32.totalorder %s179, %s193
    %p195 = scmp.eq.s32.totalorder %s22, 0
    %p196 = por %p194, %p195
    %s198 = sadd.s32 %s197, 1
    %p201 = scmp.eq.s32.totalorder %s16, 1
    %p202 = scmp.ne.s32.totalorder %s197, %s199
    %p203 = scmp.eq.s32.totalorder %s16, 0
    %p204 = por %p202, %p203
    %p205 = scmp.ne.s32.totalorder %s197, %s199
    %p206 = scmp.eq.s32.totalorder %s21, 1
    %p207 = por %p205, %p206
    %p208 = scmp.ne.s32.totalorder %s199, %s200
    %p209 = scmp.eq.s32.totalorder %s21, 0
    %p210 = por %p208, %p209
    %p211 = scmp.ne.s32.totalorder %s199, %s200
    %p212 = scmp.eq.s32.totalorder %s22, 1
    %p213 = por %p211, %p212
    %p215 = scmp.ne.s32.totalorder %s200, %s214
    %p216 = scmp.eq.s32.totalorder %s22, 0
    %p217 = por %p215, %p216
    %s219 = sadd.s32 %s218, 1
    %p222 = scmp.eq.s32.totalorder %s16, 1
    %p223 = scmp.ne.s32.totalorder %s218, %s220
    %p224 = scmp.eq.s32.totalorder %s16, 0
    %p225 = por %p223, %p224
    %p226 = scmp.ne.s32.totalorder %s218, %s220
    %p227 = scmp.eq.s32.totalorder %s21, 1
    %p228 = por %p226, %p227
    %p229 = scmp.ne.s32.totalorder %s220, %s221
    %p230 = scmp.eq.s32.totalorder %s21, 0
    %p231 = por %p229, %p230
    %p232 = scmp.ne.s32.totalorder %s220, %s221
    %p233 = scmp.eq.s32.totalorder %s22, 1
    %p234 = por %p232, %p233
    %p236 = scmp.ne.s32.totalorder %s221, %s235
    %p237 = scmp.eq.s32.totalorder %s22, 0
    %p238 = por %p236, %p237
    %s239 = ssub.s32 %s16, %s23
    %p240 = scmp.eq.s32.totalorder %s239, 0
    %s242 = sadd.s32 %s241, 1
    %s243 = scalar_select %p240, %s241, %s242
    %p246 = pneg %p240
    %p247 = scmp.eq.s32.totalorder %s16, 1
    %p248 = por %p246, %p247
    %p249 = scmp.ne.s32.totalorder %s241, %s244
    %p250 = scmp.eq.s32.totalorder %s16, 0
    %p251 = por %p249, %p250
    %p252 = scmp.ne.s32.totalorder %s241, %s244
    %p253 = scmp.eq.s32.totalorder %s21, 1
    %p254 = por %p252, %p253
    %p255 = scmp.ne.s32.totalorder %s244, %s245
    %p256 = scmp.eq.s32.totalorder %s21, 0
    %p257 = por %p255, %p256
    %p258 = scmp.ne.s32.totalorder %s244, %s245
    %p259 = scmp.eq.s32.totalorder %s22, 1
    %p260 = por %p258, %p259
    %p262 = scmp.ne.s32.totalorder %s245, %s261
    %p263 = scmp.eq.s32.totalorder %s22, 0
    %p264 = por %p262, %p263
    %p265 = scmp.le.s32.totalorder 1, %s16
    %p266 = scmp.lt.s32.totalorder %s16, 3
    %p267 = pnand %p265, %p266
    %p268 = pneg %p267
    // Predicated region
    $region9: #{bottleneck_forward.1} parent=5 // pred_check
      _
    $region10: #{bottleneck_forward.1} parent=5 // pred_check_branch
      %270 = sbr.rel (%p267) target = $region12
    $region11: #{bottleneck_forward.1} parent=5 // pred_region
      %s271 = ssub.s32 %s16, 1
      // Predicated region
      $region13: #{bottleneck_forward.1} parent=11 // pred_check
        %p272 = pneg %p63
      $region14: #{bottleneck_forward.1} parent=11 // pred_check_branch
        %274 = sbr.rel (%p272) target = $region16
      $region15: #{bottleneck_forward.1} parent=11 // pred_region
        _
      $region16: #{bottleneck_forward.1} parent=11 // pred_fallthru
        _
      // Predicated region
      $region17: #{bottleneck_forward.1} parent=11 // pred_check
        %p275 = pneg %p84
      $region18: #{bottleneck_forward.1} parent=11 // pred_check_branch
        %277 = sbr.rel (%p275) target = $region20
      $region19: #{bottleneck_forward.1} parent=11 // pred_region
        _
      $region20: #{bottleneck_forward.1} parent=11 // pred_fallthru
        _
      // Predicated region
      $region21: #{bottleneck_forward.1} parent=11 // pred_check
        %p278 = pneg %p105
      $region22: #{bottleneck_forward.1} parent=11 // pred_check_branch
        %280 = sbr.rel (%p278) target = $region24
      $region23: #{bottleneck_forward.1} parent=11 // pred_region
        _
      $region24: #{bottleneck_forward.1} parent=11 // pred_fallthru
        _
      // Predicated region
      $region25: #{bottleneck_forward.1} parent=11 // pred_check
        %p281 = pneg %p126
      $region26: #{bottleneck_forward.1} parent=11 // pred_check_branch
        %283 = sbr.rel (%p281) target = $region28
      $region27: #{bottleneck_forward.1} parent=11 // pred_region
        _
      $region28: #{bottleneck_forward.1} parent=11 // pred_fallthru
        _
      // Predicated region
      $region29: #{bottleneck_forward.1} parent=11 // pred_check
        %p284 = pneg %p147
      $region30: #{bottleneck_forward.1} parent=11 // pred_check_branch
        %286 = sbr.rel (%p284) target = $region32
      $region31: #{bottleneck_forward.1} parent=11 // pred_region
        _
      $region32: #{bottleneck_forward.1} parent=11 // pred_fallthru
        _
      // Predicated region
      $region33: #{bottleneck_forward.1} parent=11 // pred_check
        %p287 = pneg %p168
      $region34: #{bottleneck_forward.1} parent=11 // pred_check_branch
        %289 = sbr.rel (%p287) target = $region36
      $region35: #{bottleneck_forward.1} parent=11 // pred_region
        _
      $region36: #{bottleneck_forward.1} parent=11 // pred_fallthru
        _
      // Predicated region
      $region37: #{bottleneck_forward.1} parent=11 // pred_check
        %p290 = pneg %p189
      $region38: #{bottleneck_forward.1} parent=11 // pred_check_branch
        %292 = sbr.rel (%p290) target = $region40
      $region39: #{bottleneck_forward.1} parent=11 // pred_region
        _
      $region40: #{bottleneck_forward.1} parent=11 // pred_fallthru
        _
      // Predicated region
      $region41: #{bottleneck_forward.1} parent=11 // pred_check
        %p293 = pneg %p210
      $region42: #{bottleneck_forward.1} parent=11 // pred_check_branch
        %295 = sbr.rel (%p293) target = $region44
      $region43: #{bottleneck_forward.1} parent=11 // pred_region
        _
      $region44: #{bottleneck_forward.1} parent=11 // pred_fallthru
        _
      // Predicated region
      $region45: #{bottleneck_forward.1} parent=11 // pred_check
        %p296 = pneg %p231
      $region46: #{bottleneck_forward.1} parent=11 // pred_check_branch
        %298 = sbr.rel (%p296) target = $region48
      $region47: #{bottleneck_forward.1} parent=11 // pred_region
        _
      $region48: #{bottleneck_forward.1} parent=11 // pred_fallthru
        _
    $region12: #{bottleneck_forward.1} parent=5 // pred_fallthru
      _
    %p299 = scmp.lt.s32.totalorder %s16, 2
    // Predicated region
    $region49: #{bottleneck_forward.1} parent=5 // pred_check
      %p300 = pneg %p299
    $region50: #{bottleneck_forward.1} parent=5 // pred_check_branch
      %302 = sbr.rel (%p300) target = $region52
    $region51: #{bottleneck_forward.1} parent=5 // pred_region
      // Predicated region
      $region53: #{bottleneck_forward.1} parent=51 // pred_check
        %p303 = pneg %p36
      $region54: #{bottleneck_forward.1} parent=51 // pred_check_branch
        %305 = sbr.rel (%p303) target = $region56
      $region55: #{bottleneck_forward.1} parent=51 // pred_region
        %p306 = scmp.lt.s32.totalorder %s16, 1
        %s307 = scalar_select %p306, %s16, 1
        %s308 = smul.addr %s307, 4
        %s309 = smul.addr %s308, 8
        %s310 = scalar_lea.vmem %s0, %s309
      $region56: #{bottleneck_forward.1} parent=51 // pred_fallthru
        _
    $region52: #{bottleneck_forward.1} parent=5 // pred_fallthru
      _
    %p311 = scmp.le.s32.totalorder 1, %s16
    %p312 = scmp.lt.s32.totalorder %s16, 3
    %p313 = pnand %p311, %p312
    %p314 = pneg %p313
    // Predicated region
    $region57: #{bottleneck_forward.1} parent=5 // pred_check
      _
    $region58: #{bottleneck_forward.1} parent=5 // pred_check_branch
      %316 = sbr.rel (%p313) target = $region60
    $region59: #{bottleneck_forward.1} parent=5 // pred_region
      %s317 = ssub.s32 %s16, 1
      %p318 = scmp.lt.s32.totalorder %s21, 1
      %s319 = scalar_select %p318, %s21, 1
      %s320 = smul.addr %s319, 4
      %s321 = smul.addr %s320, 8
      %s322 = scalar_lea.vmem %s0, %s321
      %p323 = pneg %p42
      %p324 = pneg %p39
      %p325 = pneg %p63
      %p326 = pneg %p60
      %p327 = pneg %p84
      %p328 = pneg %p81
      %p329 = pneg %p105
      %p330 = pneg %p102
      %p331 = pneg %p126
      %p332 = pneg %p123
      %p333 = pneg %p147
      %p334 = pneg %p144
      %p335 = pneg %p168
      %p336 = pneg %p165
      %p337 = pneg %p189
      %p338 = pneg %p186
      %p339 = pneg %p210
      %p340 = pneg %p207
      %p341 = pneg %p231
      %p342 = pneg %p228
      %p343 = pneg %p257
      %p344 = pneg %p254
      %p345 = scmp.lt.s32.totalorder %s21, 1
      %s346 = scalar_select %p345, %s21, 1
      %s347 = smul.addr %s346, 4
      %s348 = smul.addr %s347, 8
      %s349 = scalar_lea.vmem %s10, %s348
      %p350 = scmp.lt.s32.totalorder %s21, 1
      %s351 = scalar_select %p350, %s21, 1
      %s352 = smul.addr %s351, 4
      %s353 = smul.addr %s352, 8
      %s354 = scalar_lea.vmem %s0, %s353
      %p355 = scmp.lt.s32.totalorder %s21, 1
      %s356 = scalar_select %p355, %s21, 1
      %s357 = smul.addr %s356, 4
      %s358 = smul.addr %s357, 8
      %s359 = scalar_lea.vmem %s10, %s358
      %v360 = vld [vmem:[%s354] sm:$0xff]
      %v361 = vld [vmem:[%s354 + $0x8] sm:$0xff]
      %v362 = vld [vmem:[%s354 + $0x10] sm:$0xff]
      %v363 = vld [vmem:[%s354 + $0x18] sm:$0xff]
      %v364 = vld [vmem:[%s1] sm:$0xf]
      %vm365 = vcmask 130048
      %v367 = vsel %vm365, %v364, 0
      %369 = vmatpush.msra.mxu0 0.0
      %370 = vmatpush.msra.mxu0 0.0
      %371 = vmatpush.msra.mxu0 0.0
      %372 = vmatpush.msra.mxu0 0.0
      %373 = vmatpush.msra.mxu0 0.0
      %374 = vmatpush.msra.mxu0 0.0
      %375 = vmatpush.msra.mxu0 0.0
      %376 = vmatpush.msra.mxu0 0.0
      %377 = vmatpush.msra.mxu0 0.0
      %378 = vmatpush.msra.mxu0 0.0
      %379 = vmatpush.msra.mxu0 0.0
      %380 = vmatpush.msra.mxu0 0.0
      %381 = vmatpush.msra.mxu0 0.0
      %382 = vmatpush.msra.mxu0 0.0
      %383 = vmatpush.msra.mxu0 %v362
      %384 = vmatpush.msra.mxu0 %v360
      %385 = vmatmul.f32.gmra.mxu0 %v367
      %v386 = vpop.f32.mrf.mxu0
      %v387 = vadd.f32 0.0, %v386
      %388 = vdwg.mxu0
      %389 = vmatpush.msra.mxu0 0.0
      %390 = vmatpush.msra.mxu0 0.0
      %391 = vmatpush.msra.mxu0 0.0
      %392 = vmatpush.msra.mxu0 0.0
      %393 = vmatpush.msra.mxu0 0.0
      %394 = vmatpush.msra.mxu0 0.0
      %395 = vmatpush.msra.mxu0 0.0
      %396 = vmatpush.msra.mxu0 0.0
      %397 = vmatpush.msra.mxu0 0.0
      %398 = vmatpush.msra.mxu0 0.0
      %399 = vmatpush.msra.mxu0 0.0
      %400 = vmatpush.msra.mxu0 0.0
      %401 = vmatpush.msra.mxu0 0.0
      %402 = vmatpush.msra.mxu0 0.0
      %403 = vmatpush.msra.mxu0 %v363
      %404 = vmatpush.msra.mxu0 %v361
      %405 = vmatmul.f32.gmra.mxu0 %v367
      %v406 = vpop.f32.mrf.mxu0
      %v407 = vadd.f32 0.0, %v406
      %408 = vdwg.mxu0
      %v409 = vld [vmem:[%s2] sm:$0xf]
      %411 = vset.pattern.permute.xlu0 0
      %412 = vperm.xlu0 %411, %v409
      %v413 = vpop.permute.xlu0 %412
      %v415 = vmul.f32 %v387, %v413
      %v416 = vmul.f32 %v407, %v413
      %v417 = vld [vmem:[%s3] sm:$0xf]
      %419 = vset.pattern.permute.xlu0 0
      %420 = vperm.xlu0 %419, %v417
      %v421 = vpop.permute.xlu0 %420
      %v423 = vadd.f32 %v415, %v421
      %v424 = vadd.f32 %v416, %v421
      %vm425 = vcmp.ge.f32.partialorder %v423, 0.0
      %vm426 = vcmp.ge.f32.partialorder %v424, 0.0
      %v427 = vmul.f32 %v423, 0.01
      %v428 = vmul.f32 %v424, 0.01
      %v429 = vsel %vm425, %v423, %v427
      %v430 = vsel %vm426, %v424, %v428
      %431 = vst [vmem:[#allocation2] sm:$0xf] 0.0
      %432 = vst [vmem:[#allocation2 + $0xc] sm:$0xf] 0.0
      %v435 = vrot.slane %v430, 4
      %vm436 = vcmask 1043456
      %v437 = vsel %vm436, %v429, %v435
      %439 = vst [vmem:[#allocation2 + $0x4] sm:$0xff] %v437
      %v440 = vlaneseq
      %v441 = vand.u32 %v440, 127
      %v442 = vadd.s32 %v441, 128
      %vm443 = vcmp.lt.s32.totalorder %v441, 0
      %v444 = vsub.s32 0, %v441
      %v445 = vsel %vm443, %v444, %v441
      %v446 = vshrl.u32 %v445, 4
      %v447 = vand.u32 %v445, 15
      %v448 = vsub.s32 0, %v447
      %v449 = vsel %vm443, %v448, %v447
      %vm450 = vcmp.lt.s32.totalorder %v442, 0
      %v451 = vsub.s32 0, %v442
      %v452 = vsel %vm450, %v451, %v442
      %v453 = vshrl.u32 %v452, 4
      %v454 = vand.u32 %v452, 15
      %v455 = vsub.s32 0, %v454
      %v456 = vsel %vm450, %v455, %v454
      %vm457 = vcmp.ne.s32.totalorder %v449, 0
      %vm458 = vcmp.ne.s32.totalorder %v456, 0
      %vm459 = vcmp.lt.s32.totalorder %v449, 0
      %vm460 = vcmp.lt.s32.totalorder %v456, 0
      %vm461 = vmand %vm459, %vm457
      %vm462 = vmand %vm460, %vm458
      %v463 = vadd.s32 %v449, 16
      %v464 = vadd.s32 %v456, 16
      %v465 = vsel %vm461, %v463, %v449
      %v466 = vsel %vm462, %v464, %v456
      %vm467 = vcmp.ge.s32.totalorder %v465, 1
      %vm468 = vcmp.ge.s32.totalorder %v466, 1
      %v469 = vsel %vm467, 1, 0
      %v470 = vsel %vm468, 1, 0
      %v471 = vcvt.s32.f32 %v469
      %v472 = vcvt.s32.f32 %v470
      %vm473 = vcmp.lt.s32.totalorder %v465, 15
      %vm474 = vcmp.lt.s32.totalorder %v466, 15
      %v475 = vsel %vm473, 1, 0
      %v476 = vsel %vm474, 1, 0
      %v477 = vcvt.s32.f32 %v475
      %v478 = vcvt.s32.f32 %v476
      %v479 = vld [vmem:[#allocation2] sm:$0xff]
      %v480 = vld [vmem:[#allocation2 + $0x8] sm:$0xf]
      %v483 = vrot.slane %v472, 4
      %v484 = vsel %vm436, %v471, %v483
      %485 = vrot.lane.b32.xlu0 %v484, 111
      %v486 = vpop.permute.xlu0 %485
      %v487 = vrot.slane %v486, 4
      %vm488 = vcmask 908288
      %v489 = vsel %vm488, %v487, %v486
      %v492 = vmul.f32 %v479, %v489
      %v493 = vmul.f32 %v480, %v487
      %v494 = vld [vmem:[%s4] sm:$0xf]
      %s495 = scalar_lea.vmem %s4, 4
      %v496 = vld [vmem:[%s495] sm:$0xf]
      %499 = vst [vmem:[#allocation1] ss:$2 sm:$0xff] %v479
      %s500 = scalar_lea.vmem [#allocation1], 16
      %501 = vst [vmem:[%s500] ss:$2 sm:$0xff] %v480
      %v502 = vld.sshfl [vmem:[#allocation1] sm:$0xff pattern:$0x75316420]
      %v503 = vld.sshfl [vmem:[#allocation1 + $0x8] sm:$0xff pattern:$0x75316420]
      %v504 = vld.sshfl [vmem:[#allocation1 + $0x10] sm:$0xff pattern:$0x75316420]
      %505 = vrot.lane.b32.xlu0 %v502, 16
      %v506 = vpop.permute.xlu0 %505
      %507 = vrot.lane.b32.xlu0 %v503, 16
      %v508 = vpop.permute.xlu0 %507
      %509 = vrot.lane.b32.xlu0 %v504, 16
      %v510 = vpop.permute.xlu0 %509
      %v511 = vsel %vm365, %v506, %v508
      %v512 = vsel %vm365, %v508, %v510
      %vm513 = vcmask 31744
      %v515 = vsel %vm513, %v496, 0
      %v517 = vsel %vm436, %v511, 0
      %v519 = vsel %vm436, %v512, 0
      %521 = vmatpush.msra.mxu0 0.0
      %522 = vmatpush.msra.mxu0 0.0
      %523 = vmatpush.msra.mxu0 0.0
      %524 = vmatpush.msra.mxu0 0.0
      %525 = vmatpush.msra.mxu0 0.0
      %526 = vmatpush.msra.mxu0 0.0
      %527 = vmatpush.msra.mxu0 0.0
      %528 = vmatpush.msra.mxu0 0.0
      %529 = vmatpush.msra.mxu0 0.0
      %530 = vmatpush.msra.mxu0 0.0
      %531 = vmatpush.msra.mxu0 0.0
      %532 = vmatpush.msra.mxu0 0.0
      %533 = vmatpush.msra.mxu0 0.0
      %534 = vmatpush.msra.mxu0 0.0
      %535 = vmatpush.msra.mxu0 0.0
      %536 = vmatpush.msra.mxu0 %v517
      %537 = vmatmul.f32.gmra.mxu0 %v515
      %v538 = vpop.f32.mrf.mxu0
      %v539 = vadd.f32 0.0, %v538
      %540 = vdwg.mxu0
      %541 = vmatpush.msra.mxu0 0.0
      %542 = vmatpush.msra.mxu0 0.0
      %543 = vmatpush.msra.mxu0 0.0
      %544 = vmatpush.msra.mxu0 0.0
      %545 = vmatpush.msra.mxu0 0.0
      %546 = vmatpush.msra.mxu0 0.0
      %547 = vmatpush.msra.mxu0 0.0
      %548 = vmatpush.msra.mxu0 0.0
      %549 = vmatpush.msra.mxu0 0.0
      %550 = vmatpush.msra.mxu0 0.0
      %551 = vmatpush.msra.mxu0 0.0
      %552 = vmatpush.msra.mxu0 0.0
      %553 = vmatpush.msra.mxu0 0.0
      %554 = vmatpush.msra.mxu0 0.0
      %555 = vmatpush.msra.mxu0 0.0
      %556 = vmatpush.msra.mxu0 %v519
      %557 = vmatmul.f32.gmra.mxu0 %v515
      %v558 = vpop.f32.mrf.mxu0
      %v559 = vadd.f32 0.0, %v558
      %560 = vdwg.mxu0
      %563 = vst [vmem:[#allocation1] ss:$2 sm:$0xff] %v492
      %s564 = scalar_lea.vmem [#allocation1], 16
      %565 = vst [vmem:[%s564] ss:$2 sm:$0xff] %v493
      %v566 = vld.sshfl [vmem:[#allocation1] sm:$0xff pattern:$0x75316420]
      %v567 = vld.sshfl [vmem:[#allocation1 + $0x8] sm:$0xff pattern:$0x75316420]
      %v568 = vld.sshfl [vmem:[#allocation1 + $0x10] sm:$0xff pattern:$0x75316420]
      %569 = vrot.lane.b32.xlu0 %v566, 17
      %v570 = vpop.permute.xlu0 %569
      %571 = vrot.lane.b32.xlu0 %v567, 17
      %v572 = vpop.permute.xlu0 %571
      %573 = vrot.lane.b32.xlu0 %v568, 17
      %v574 = vpop.permute.xlu0 %573
      %vm575 = vcmask 138240
      %v576 = vsel %vm575, %v570, %v572
      %v577 = vsel %vm575, %v572, %v574
      %v579 = vsel %vm513, %v494, 0
      %v581 = vsel %vm436, %v576, 0
      %v583 = vsel %vm436, %v577, 0
      %585 = vmatpush.msra.mxu0 0.0
      %586 = vmatpush.msra.mxu0 0.0
      %587 = vmatpush.msra.mxu0 0.0
      %588 = vmatpush.msra.mxu0 0.0
      %589 = vmatpush.msra.mxu0 0.0
      %590 = vmatpush.msra.mxu0 0.0
      %591 = vmatpush.msra.mxu0 0.0
      %592 = vmatpush.msra.mxu0 0.0
      %593 = vmatpush.msra.mxu0 0.0
      %594 = vmatpush.msra.mxu0 0.0
      %595 = vmatpush.msra.mxu0 0.0
      %596 = vmatpush.msra.mxu0 0.0
      %597 = vmatpush.msra.mxu0 0.0
      %598 = vmatpush.msra.mxu0 0.0
      %599 = vmatpush.msra.mxu0 0.0
      %600 = vmatpush.msra.mxu0 %v581
      %601 = vmatmul.f32.gmra.mxu0 %v579
      %v602 = vpop.f32.mrf.mxu0
      %v603 = vadd.f32 %v539, %v602
      %604 = vdwg.mxu0
      %605 = vmatpush.msra.mxu0 0.0
      %606 = vmatpush.msra.mxu0 0.0
      %607 = vmatpush.msra.mxu0 0.0
      %608 = vmatpush.msra.mxu0 0.0
      %609 = vmatpush.msra.mxu0 0.0
      %610 = vmatpush.msra.mxu0 0.0
      %611 = vmatpush.msra.mxu0 0.0
      %612 = vmatpush.msra.mxu0 0.0
      %613 = vmatpush.msra.mxu0 0.0
      %614 = vmatpush.msra.mxu0 0.0
      %615 = vmatpush.msra.mxu0 0.0
      %616 = vmatpush.msra.mxu0 0.0
      %617 = vmatpush.msra.mxu0 0.0
      %618 = vmatpush.msra.mxu0 0.0
      %619 = vmatpush.msra.mxu0 0.0
      %620 = vmatpush.msra.mxu0 %v583
      %621 = vmatmul.f32.gmra.mxu0 %v579
      %v622 = vpop.f32.mrf.mxu0
      %v623 = vadd.f32 %v559, %v622
      %624 = vdwg.mxu0
      %v625 = vld [vmem:[#allocation2] sm:$0xff]
      %v626 = vld [vmem:[#allocation2 + $0x8] sm:$0xf]
      %v629 = vrot.slane %v478, 4
      %v630 = vsel %vm436, %v477, %v629
      %631 = vrot.lane.b32.xlu0 %v630, 113
      %v632 = vpop.permute.xlu0 %631
      %v633 = vrot.slane %v632, 4
      %vm634 = vcmask 924672
      %v635 = vsel %vm634, %v633, %v632
      %v638 = vmul.f32 %v625, %v635
      %v639 = vmul.f32 %v626, %v633
      %s640 = scalar_lea.vmem %s4, 8
      %v641 = vld [vmem:[%s640] sm:$0xf]
      %644 = vst [vmem:[#allocation1] ss:$2 sm:$0xff] %v638
      %s645 = scalar_lea.vmem [#allocation1], 16
      %646 = vst [vmem:[%s645] ss:$2 sm:$0xff] %v639
      %v647 = vld.sshfl [vmem:[#allocation1] sm:$0xff pattern:$0x75316420]
      %v648 = vld.sshfl [vmem:[#allocation1 + $0x8] sm:$0xff pattern:$0x75316420]
      %v649 = vld.sshfl [vmem:[#allocation1 + $0x10] sm:$0xff pattern:$0x75316420]
      %650 = vrot.lane.b32.xlu0 %v647, 15
      %v651 = vpop.permute.xlu0 %650
      %652 = vrot.lane.b32.xlu0 %v648, 15
      %v653 = vpop.permute.xlu0 %652
      %654 = vrot.lane.b32.xlu0 %v649, 15
      %v655 = vpop.permute.xlu0 %654
      %vm656 = vcmask 121856
      %v657 = vsel %vm656, %v651, %v653
      %v658 = vsel %vm656, %v653, %v655
      %v660 = vsel %vm513, %v641, 0
      %v662 = vsel %vm436, %v657, 0
      %v664 = vsel %vm436, %v658, 0
      %666 = vmatpush.msra.mxu0 0.0
      %667 = vmatpush.msra.mxu0 0.0
      %668 = vmatpush.msra.mxu0 0.0
      %669 = vmatpush.msra.mxu0 0.0
      %670 = vmatpush.msra.mxu0 0.0
      %671 = vmatpush.msra.mxu0 0.0
      %672 = vmatpush.msra.mxu0 0.0
      %673 = vmatpush.msra.mxu0 0.0
      %674 = vmatpush.msra.mxu0 0.0
      %675 = vmatpush.msra.mxu0 0.0
      %676 = vmatpush.msra.mxu0 0.0
      %677 = vmatpush.msra.mxu0 0.0
      %678 = vmatpush.msra.mxu0 0.0
      %679 = vmatpush.msra.mxu0 0.0
      %680 = vmatpush.msra.mxu0 0.0
      %681 = vmatpush.msra.mxu0 %v662
      %682 = vmatmul.f32.gmra.mxu0 %v660
      %v683 = vpop.f32.mrf.mxu0
      %v684 = vadd.f32 0.0, %v683
      %685 = vdwg.mxu0
      %686 = vmatpush.msra.mxu0 0.0
      %687 = vmatpush.msra.mxu0 0.0
      %688 = vmatpush.msra.mxu0 0.0
      %689 = vmatpush.msra.mxu0 0.0
      %690 = vmatpush.msra.mxu0 0.0
      %691 = vmatpush.msra.mxu0 0.0
      %692 = vmatpush.msra.mxu0 0.0
      %693 = vmatpush.msra.mxu0 0.0
      %694 = vmatpush.msra.mxu0 0.0
      %695 = vmatpush.msra.mxu0 0.0
      %696 = vmatpush.msra.mxu0 0.0
      %697 = vmatpush.msra.mxu0 0.0
      %698 = vmatpush.msra.mxu0 0.0
      %699 = vmatpush.msra.mxu0 0.0
      %700 = vmatpush.msra.mxu0 0.0
      %701 = vmatpush.msra.mxu0 %v664
      %702 = vmatmul.f32.gmra.mxu0 %v660
      %v703 = vpop.f32.mrf.mxu0
      %v704 = vadd.f32 0.0, %v703
      %705 = vdwg.mxu0
      %v706 = vadd.f32 %v603, %v684
      %v707 = vadd.f32 %v623, %v704
      %v708 = vld [vmem:[#allocation2] sm:$0xff]
      %v709 = vld [vmem:[#allocation2 + $0x8] sm:$0xf]
      %710 = vrot.lane.b32.xlu0 %v484, 127
      %v711 = vpop.permute.xlu0 %710
      %v712 = vrot.slane %v711, 4
      %vm713 = vcmask 1039360
      %v714 = vsel %vm713, %v712, %v711
      %v717 = vmul.f32 %v708, %v714
      %v718 = vmul.f32 %v709, %v712
      %s719 = scalar_lea.vmem %s4, 12
      %v720 = vld [vmem:[%s719] sm:$0xf]
      %723 = vst [vmem:[#allocation1] ss:$2 sm:$0xff] %v717
      %s724 = scalar_lea.vmem [#allocation1], 16
      %725 = vst [vmem:[%s724] ss:$2 sm:$0xff] %v718
      %v726 = vld.sshfl [vmem:[#allocation1] sm:$0xff pattern:$0x75316420]
      %v727 = vld.sshfl [vmem:[#allocation1 + $0x8] sm:$0xff pattern:$0x75316420]
      %v728 = vld.sshfl [vmem:[#allocation1 + $0x10] sm:$0xff pattern:$0x75316420]
      %729 = vrot.lane.b32.xlu0 %v726, 1
      %v730 = vpop.permute.xlu0 %729
      %731 = vrot.lane.b32.xlu0 %v727, 1
      %v732 = vpop.permute.xlu0 %731
      %733 = vrot.lane.b32.xlu0 %v728, 1
      %v734 = vpop.permute.xlu0 %733
      %vm735 = vcmask 7168
      %v736 = vsel %vm735, %v730, %v732
      %v737 = vsel %vm735, %v732, %v734
      %v739 = vsel %vm513, %v720, 0
      %v741 = vsel %vm436, %v736, 0
      %v743 = vsel %vm436, %v737, 0
      %745 = vmatpush.msra.mxu0 0.0
      %746 = vmatpush.msra.mxu0 0.0
      %747 = vmatpush.msra.mxu0 0.0
      %748 = vmatpush.msra.mxu0 0.0
      %749 = vmatpush.msra.mxu0 0.0
      %750 = vmatpush.msra.mxu0 0.0
      %751 = vmatpush.msra.mxu0 0.0
      %752 = vmatpush.msra.mxu0 0.0
      %753 = vmatpush.msra.mxu0 0.0
      %754 = vmatpush.msra.mxu0 0.0
      %755 = vmatpush.msra.mxu0 0.0
      %756 = vmatpush.msra.mxu0 0.0
      %757 = vmatpush.msra.mxu0 0.0
      %758 = vmatpush.msra.mxu0 0.0
      %759 = vmatpush.msra.mxu0 0.0
      %760 = vmatpush.msra.mxu0 %v741
      %761 = vmatmul.f32.gmra.mxu0 %v739
      %v762 = vpop.f32.mrf.mxu0
      %v763 = vadd.f32 0.0, %v762
      %764 = vdwg.mxu0
      %765 = vmatpush.msra.mxu0 0.0
      %766 = vmatpush.msra.mxu0 0.0
      %767 = vmatpush.msra.mxu0 0.0
      %768 = vmatpush.msra.mxu0 0.0
      %769 = vmatpush.msra.mxu0 0.0
      %770 = vmatpush.msra.mxu0 0.0
      %771 = vmatpush.msra.mxu0 0.0
      %772 = vmatpush.msra.mxu0 0.0
      %773 = vmatpush.msra.mxu0 0.0
      %774 = vmatpush.msra.mxu0 0.0
      %775 = vmatpush.msra.mxu0 0.0
      %776 = vmatpush.msra.mxu0 0.0
      %777 = vmatpush.msra.mxu0 0.0
      %778 = vmatpush.msra.mxu0 0.0
      %779 = vmatpush.msra.mxu0 0.0
      %780 = vmatpush.msra.mxu0 %v743
      %781 = vmatmul.f32.gmra.mxu0 %v739
      %v782 = vpop.f32.mrf.mxu0
      %v783 = vadd.f32 0.0, %v782
      %784 = vdwg.mxu0
      %v785 = vadd.f32 %v706, %v763
      %v786 = vadd.f32 %v707, %v783
      %s787 = scalar_lea.vmem %s4, 16
      %v788 = vld [vmem:[%s787] sm:$0xf]
      %v790 = vsel %vm513, %v788, 0
      %v792 = vsel %vm436, %v429, 0
      %v794 = vsel %vm436, %v430, 0
      %796 = vmatpush.msra.mxu0 0.0
      %797 = vmatpush.msra.mxu0 0.0
      %798 = vmatpush.msra.mxu0 0.0
      %799 = vmatpush.msra.mxu0 0.0
      %800 = vmatpush.msra.mxu0 0.0
      %801 = vmatpush.msra.mxu0 0.0
      %802 = vmatpush.msra.mxu0 0.0
      %803 = vmatpush.msra.mxu0 0.0
      %804 = vmatpush.msra.mxu0 0.0
      %805 = vmatpush.msra.mxu0 0.0
      %806 = vmatpush.msra.mxu0 0.0
      %807 = vmatpush.msra.mxu0 0.0
      %808 = vmatpush.msra.mxu0 0.0
      %809 = vmatpush.msra.mxu0 0.0
      %810 = vmatpush.msra.mxu0 0.0
      %811 = vmatpush.msra.mxu0 %v792
      %812 = vmatmul.f32.gmra.mxu0 %v790
      %v813 = vpop.f32.mrf.mxu0
      %v814 = vadd.f32 0.0, %v813
      %815 = vdwg.mxu0
      %816 = vmatpush.msra.mxu0 0.0
      %817 = vmatpush.msra.mxu0 0.0
      %818 = vmatpush.msra.mxu0 0.0
      %819 = vmatpush.msra.mxu0 0.0
      %820 = vmatpush.msra.mxu0 0.0
      %821 = vmatpush.msra.mxu0 0.0
      %822 = vmatpush.msra.mxu0 0.0
      %823 = vmatpush.msra.mxu0 0.0
      %824 = vmatpush.msra.mxu0 0.0
      %825 = vmatpush.msra.mxu0 0.0
      %826 = vmatpush.msra.mxu0 0.0
      %827 = vmatpush.msra.mxu0 0.0
      %828 = vmatpush.msra.mxu0 0.0
      %829 = vmatpush.msra.mxu0 0.0
      %830 = vmatpush.msra.mxu0 0.0
      %831 = vmatpush.msra.mxu0 %v794
      %832 = vmatmul.f32.gmra.mxu0 %v790
      %v833 = vpop.f32.mrf.mxu0
      %v834 = vadd.f32 0.0, %v833
      %835 = vdwg.mxu0
      %v836 = vadd.f32 %v785, %v814
      %v837 = vadd.f32 %v786, %v834
      %v838 = vld [vmem:[#allocation2 + $0x4] sm:$0xff]
      %v839 = vld [vmem:[#allocation2 + $0xc] sm:$0xf]
      %840 = vrot.lane.b32.xlu0 %v630, 1
      %v841 = vpop.permute.xlu0 %840
      %v842 = vrot.slane %v841, 4
      %v843 = vsel %vm735, %v842, %v841
      %v846 = vmul.f32 %v838, %v843
      %v847 = vmul.f32 %v839, %v842
      %s848 = scalar_lea.vmem %s4, 20
      %v849 = vld [vmem:[%s848] sm:$0xf]
      %852 = vst [vmem:[#allocation1] ss:$2 sm:$0xff] %v846
      %s853 = scalar_lea.vmem [#allocation1], 16
      %854 = vst [vmem:[%s853] ss:$2 sm:$0xff] %v847
      %v855 = vld.sshfl [vmem:[#allocation1] sm:$0xff pattern:$0x75316420]
      %v856 = vld.sshfl [vmem:[#allocation1 + $0x8] sm:$0xff pattern:$0x75316420]
      %v857 = vld.sshfl [vmem:[#allocation1 + $0x10] sm:$0xff pattern:$0x75316420]
      %858 = vrot.lane.b32.xlu0 %v855, 127
      %v859 = vpop.permute.xlu0 %858
      %860 = vrot.lane.b32.xlu0 %v856, 127
      %v861 = vpop.permute.xlu0 %860
      %862 = vrot.lane.b32.xlu0 %v857, 127
      %v863 = vpop.permute.xlu0 %862
      %v864 = vsel %vm713, %v859, %v861
      %v865 = vsel %vm713, %v861, %v863
      %v867 = vsel %vm513, %v849, 0
      %v869 = vsel %vm436, %v864, 0
      %v871 = vsel %vm436, %v865, 0
      %873 = vmatpush.msra.mxu0 0.0
      %874 = vmatpush.msra.mxu0 0.0
      %875 = vmatpush.msra.mxu0 0.0
      %876 = vmatpush.msra.mxu0 0.0
      %877 = vmatpush.msra.mxu0 0.0
      %878 = vmatpush.msra.mxu0 0.0
      %879 = vmatpush.msra.mxu0 0.0
      %880 = vmatpush.msra.mxu0 0.0
      %881 = vmatpush.msra.mxu0 0.0
      %882 = vmatpush.msra.mxu0 0.0
      %883 = vmatpush.msra.mxu0 0.0
      %884 = vmatpush.msra.mxu0 0.0
      %885 = vmatpush.msra.mxu0 0.0
      %886 = vmatpush.msra.mxu0 0.0
      %887 = vmatpush.msra.mxu0 0.0
      %888 = vmatpush.msra.mxu0 %v869
      %889 = vmatmul.f32.gmra.mxu0 %v867
      %v890 = vpop.f32.mrf.mxu0
      %v891 = vadd.f32 0.0, %v890
      %892 = vdwg.mxu0
      %893 = vmatpush.msra.mxu0 0.0
      %894 = vmatpush.msra.mxu0 0.0
      %895 = vmatpush.msra.mxu0 0.0
      %896 = vmatpush.msra.mxu0 0.0
      %897 = vmatpush.msra.mxu0 0.0
      %898 = vmatpush.msra.mxu0 0.0
      %899 = vmatpush.msra.mxu0 0.0
      %900 = vmatpush.msra.mxu0 0.0
      %901 = vmatpush.msra.mxu0 0.0
      %902 = vmatpush.msra.mxu0 0.0
      %903 = vmatpush.msra.mxu0 0.0
      %904 = vmatpush.msra.mxu0 0.0
      %905 = vmatpush.msra.mxu0 0.0
      %906 = vmatpush.msra.mxu0 0.0
      %907 = vmatpush.msra.mxu0 0.0
      %908 = vmatpush.msra.mxu0 %v871
      %909 = vmatmul.f32.gmra.mxu0 %v867
      %v910 = vpop.f32.mrf.mxu0
      %v911 = vadd.f32 0.0, %v910
      %912 = vdwg.mxu0
      %v913 = vadd.f32 %v836, %v891
      %v914 = vadd.f32 %v837, %v911
      %v915 = vld [vmem:[#allocation2 + $0x4] sm:$0xff]
      %v916 = vld [vmem:[#allocation2 + $0xc] sm:$0xf]
      %917 = vrot.lane.b32.xlu0 %v484, 15
      %v918 = vpop.permute.xlu0 %917
      %v919 = vrot.slane %v918, 4
      %v920 = vsel %vm656, %v919, %v918
      %v923 = vmul.f32 %v915, %v920
      %v924 = vmul.f32 %v916, %v919
      %s925 = scalar_lea.vmem %s4, 24
      %v926 = vld [vmem:[%s925] sm:$0xf]
      %929 = vst [vmem:[#allocation1] ss:$2 sm:$0xff] %v923
      %s930 = scalar_lea.vmem [#allocation1], 16
      %931 = vst [vmem:[%s930] ss:$2 sm:$0xff] %v924
      %v932 = vld.sshfl [vmem:[#allocation1] sm:$0xff pattern:$0x75316420]
      %v933 = vld.sshfl [vmem:[#allocation1 + $0x8] sm:$0xff pattern:$0x75316420]
      %v934 = vld.sshfl [vmem:[#allocation1 + $0x10] sm:$0xff pattern:$0x75316420]
      %935 = vrot.lane.b32.xlu0 %v932, 113
      %v936 = vpop.permute.xlu0 %935
      %937 = vrot.lane.b32.xlu0 %v933, 113
      %v938 = vpop.permute.xlu0 %937
      %939 = vrot.lane.b32.xlu0 %v934, 113
      %v940 = vpop.permute.xlu0 %939
      %v941 = vsel %vm634, %v936, %v938
      %v942 = vsel %vm634, %v938, %v940
      %v944 = vsel %vm513, %v926, 0
      %v946 = vsel %vm436, %v941, 0
      %v948 = vsel %vm436, %v942, 0
      %950 = vmatpush.msra.mxu0 0.0
      %951 = vmatpush.msra.mxu0 0.0
      %952 = vmatpush.msra.mxu0 0.0
      %953 = vmatpush.msra.mxu0 0.0
      %954 = vmatpush.msra.mxu0 0.0
      %955 = vmatpush.msra.mxu0 0.0
      %956 = vmatpush.msra.mxu0 0.0
      %957 = vmatpush.msra.mxu0 0.0
      %958 = vmatpush.msra.mxu0 0.0
      %959 = vmatpush.msra.mxu0 0.0
      %960 = vmatpush.msra.mxu0 0.0
      %961 = vmatpush.msra.mxu0 0.0
      %962 = vmatpush.msra.mxu0 0.0
      %963 = vmatpush.msra.mxu0 0.0
      %964 = vmatpush.msra.mxu0 0.0
      %965 = vmatpush.msra.mxu0 %v946
      %966 = vmatmul.f32.gmra.mxu0 %v944
      %v967 = vpop.f32.mrf.mxu0
      %v968 = vadd.f32 0.0, %v967
      %969 = vdwg.mxu0
      %970 = vmatpush.msra.mxu0 0.0
      %971 = vmatpush.msra.mxu0 0.0
      %972 = vmatpush.msra.mxu0 0.0
      %973 = vmatpush.msra.mxu0 0.0
      %974 = vmatpush.msra.mxu0 0.0
      %975 = vmatpush.msra.mxu0 0.0
      %976 = vmatpush.msra.mxu0 0.0
      %977 = vmatpush.msra.mxu0 0.0
      %978 = vmatpush.msra.mxu0 0.0
      %979 = vmatpush.msra.mxu0 0.0
      %980 = vmatpush.msra.mxu0 0.0
      %981 = vmatpush.msra.mxu0 0.0
      %982 = vmatpush.msra.mxu0 0.0
      %983 = vmatpush.msra.mxu0 0.0
      %984 = vmatpush.msra.mxu0 0.0
      %985 = vmatpush.msra.mxu0 %v948
      %986 = vmatmul.f32.gmra.mxu0 %v944
      %v987 = vpop.f32.mrf.mxu0
      %v988 = vadd.f32 0.0, %v987
      %989 = vdwg.mxu0
      %v990 = vadd.f32 %v913, %v968
      %v991 = vadd.f32 %v914, %v988
      %v992 = vld [vmem:[#allocation2 + $0x4] sm:$0xff]
      %v993 = vld [vmem:[#allocation2 + $0xc] sm:$0xf]
      %s994 = scalar_lea.vmem %s4, 28
      %v995 = vld [vmem:[%s994] sm:$0xf]
      %998 = vst [vmem:[#allocation1] ss:$2 sm:$0xff] %v992
      %s999 = scalar_lea.vmem [#allocation1], 16
      %1000 = vst [vmem:[%s999] ss:$2 sm:$0xff] %v993
      %v1001 = vld.sshfl [vmem:[#allocation1] sm:$0xff pattern:$0x75316420]
      %v1002 = vld.sshfl [vmem:[#allocation1 + $0x8] sm:$0xff pattern:$0x75316420]
      %v1003 = vld.sshfl [vmem:[#allocation1 + $0x10] sm:$0xff pattern:$0x75316420]
      %1004 = vrot.lane.b32.xlu0 %v1001, 112
      %v1005 = vpop.permute.xlu0 %1004
      %1006 = vrot.lane.b32.xlu0 %v1002, 112
      %v1007 = vpop.permute.xlu0 %1006
      %1008 = vrot.lane.b32.xlu0 %v1003, 112
      %v1009 = vpop.permute.xlu0 %1008
      %vm1010 = vcmask 916480
      %v1011 = vsel %vm1010, %v1005, %v1007
      %v1012 = vsel %vm1010, %v1007, %v1009
      %v1014 = vsel %vm513, %v995, 0
      %v1016 = vsel %vm436, %v1011, 0
      %v1018 = vsel %vm436, %v1012, 0
      %1020 = vmatpush.msra.mxu0 0.0
      %1021 = vmatpush.msra.mxu0 0.0
      %1022 = vmatpush.msra.mxu0 0.0
      %1023 = vmatpush.msra.mxu0 0.0
      %1024 = vmatpush.msra.mxu0 0.0
      %1025 = vmatpush.msra.mxu0 0.0
      %1026 = vmatpush.msra.mxu0 0.0
      %1027 = vmatpush.msra.mxu0 0.0
      %1028 = vmatpush.msra.mxu0 0.0
      %1029 = vmatpush.msra.mxu0 0.0
      %1030 = vmatpush.msra.mxu0 0.0
      %1031 = vmatpush.msra.mxu0 0.0
      %1032 = vmatpush.msra.mxu0 0.0
      %1033 = vmatpush.msra.mxu0 0.0
      %1034 = vmatpush.msra.mxu0 0.0
      %1035 = vmatpush.msra.mxu0 %v1016
      %1036 = vmatmul.f32.gmra.mxu0 %v1014
      %v1037 = vpop.f32.mrf.mxu0
      %v1038 = vadd.f32 0.0, %v1037
      %1039 = vdwg.mxu0
      %1040 = vmatpush.msra.mxu0 0.0
      %1041 = vmatpush.msra.mxu0 0.0
      %1042 = vmatpush.msra.mxu0 0.0
      %1043 = vmatpush.msra.mxu0 0.0
      %1044 = vmatpush.msra.mxu0 0.0
      %1045 = vmatpush.msra.mxu0 0.0
      %1046 = vmatpush.msra.mxu0 0.0
      %1047 = vmatpush.msra.mxu0 0.0
      %1048 = vmatpush.msra.mxu0 0.0
      %1049 = vmatpush.msra.mxu0 0.0
      %1050 = vmatpush.msra.mxu0 0.0
      %1051 = vmatpush.msra.mxu0 0.0
      %1052 = vmatpush.msra.mxu0 0.0
      %1053 = vmatpush.msra.mxu0 0.0
      %1054 = vmatpush.msra.mxu0 0.0
      %1055 = vmatpush.msra.mxu0 %v1018
      %1056 = vmatmul.f32.gmra.mxu0 %v1014
      %v1057 = vpop.f32.mrf.mxu0
      %v1058 = vadd.f32 0.0, %v1057
      %1059 = vdwg.mxu0
      %v1060 = vadd.f32 %v990, %v1038
      %v1061 = vadd.f32 %v991, %v1058
      %v1062 = vld [vmem:[#allocation2 + $0x4] sm:$0xff]
      %v1063 = vld [vmem:[#allocation2 + $0xc] sm:$0xf]
      %1064 = vrot.lane.b32.xlu0 %v630, 17
      %v1065 = vpop.permute.xlu0 %1064
      %v1066 = vrot.slane %v1065, 4
      %v1067 = vsel %vm575, %v1066, %v1065
      %v1070 = vmul.f32 %v1062, %v1067
      %v1071 = vmul.f32 %v1063, %v1066
      %s1072 = scalar_lea.vmem %s4, 32
      %v1073 = vld [vmem:[%s1072] sm:$0xf]
      %1076 = vst [vmem:[#allocation1] ss:$2 sm:$0xff] %v1070
      %s1077 = scalar_lea.vmem [#allocation1], 16
      %1078 = vst [vmem:[%s1077] ss:$2 sm:$0xff] %v1071
      %v1079 = vld.sshfl [vmem:[#allocation1] sm:$0xff pattern:$0x75316420]
      %v1080 = vld.sshfl [vmem:[#allocation1 + $0x8] sm:$0xff pattern:$0x75316420]
      %v1081 = vld.sshfl [vmem:[#allocation1 + $0x10] sm:$0xff pattern:$0x75316420]
      %1082 = vrot.lane.b32.xlu0 %v1079, 111
      %v1083 = vpop.permute.xlu0 %1082
      %1084 = vrot.lane.b32.xlu0 %v1080, 111
      %v1085 = vpop.permute.xlu0 %1084
      %1086 = vrot.lane.b32.xlu0 %v1081, 111
      %v1087 = vpop.permute.xlu0 %1086
      %v1088 = vsel %vm488, %v1083, %v1085
      %v1089 = vsel %vm488, %v1085, %v1087
      %v1091 = vsel %vm513, %v1073, 0
      %v1093 = vsel %vm436, %v1088, 0
      %v1095 = vsel %vm436, %v1089, 0
      %1097 = vmatpush.msra.mxu0 0.0
      %1098 = vmatpush.msra.mxu0 0.0
      %1099 = vmatpush.msra.mxu0 0.0
      %1100 = vmatpush.msra.mxu0 0.0
      %1101 = vmatpush.msra.mxu0 0.0
      %1102 = vmatpush.msra.mxu0 0.0
      %1103 = vmatpush.msra.mxu0 0.0
      %1104 = vmatpush.msra.mxu0 0.0
      %1105 = vmatpush.msra.mxu0 0.0
      %1106 = vmatpush.msra.mxu0 0.0
      %1107 = vmatpush.msra.mxu0 0.0
      %1108 = vmatpush.msra.mxu0 0.0
      %1109 = vmatpush.msra.mxu0 0.0
      %1110 = vmatpush.msra.mxu0 0.0
      %1111 = vmatpush.msra.mxu0 0.0
      %1112 = vmatpush.msra.mxu0 %v1093
      %1113 = vmatmul.f32.gmra.mxu0 %v1091
      %v1114 = vpop.f32.mrf.mxu0
      %v1115 = vadd.f32 0.0, %v1114
      %1116 = vdwg.mxu0
      %1117 = vmatpush.msra.mxu0 0.0
      %1118 = vmatpush.msra.mxu0 0.0
      %1119 = vmatpush.msra.mxu0 0.0
      %1120 = vmatpush.msra.mxu0 0.0
      %1121 = vmatpush.msra.mxu0 0.0
      %1122 = vmatpush.msra.mxu0 0.0
      %1123 = vmatpush.msra.mxu0 0.0
      %1124 = vmatpush.msra.mxu0 0.0
      %1125 = vmatpush.msra.mxu0 0.0
      %1126 = vmatpush.msra.mxu0 0.0
      %1127 = vmatpush.msra.mxu0 0.0
      %1128 = vmatpush.msra.mxu0 0.0
      %1129 = vmatpush.msra.mxu0 0.0
      %1130 = vmatpush.msra.mxu0 0.0
      %1131 = vmatpush.msra.mxu0 0.0
      %1132 = vmatpush.msra.mxu0 %v1095
      %1133 = vmatmul.f32.gmra.mxu0 %v1091
      %v1134 = vpop.f32.mrf.mxu0
      %v1135 = vadd.f32 0.0, %v1134
      %1136 = vdwg.mxu0
      %v1137 = vadd.f32 %v1060, %v1115
      %v1138 = vadd.f32 %v1061, %v1135
      %v1139 = vld [vmem:[%s5] sm:$0xf]
      %1141 = vset.pattern.permute.xlu0 0
      %1142 = vperm.xlu0 %1141, %v1139
      %v1143 = vpop.permute.xlu0 %1142
      %v1145 = vmul.f32 %v1137, %v1143
      %v1146 = vmul.f32 %v1138, %v1143
      %v1147 = vld [vmem:[%s6] sm:$0xf]
      %1149 = vset.pattern.permute.xlu0 0
      %1150 = vperm.xlu0 %1149, %v1147
      %v1151 = vpop.permute.xlu0 %1150
      %v1153 = vadd.f32 %v1145, %v1151
      %v1154 = vadd.f32 %v1146, %v1151
      %vm1155 = vcmp.ge.f32.partialorder %v1153, 0.0
      %vm1156 = vcmp.ge.f32.partialorder %v1154, 0.0
      %v1157 = vmul.f32 %v1153, 0.01
      %v1158 = vmul.f32 %v1154, 0.01
      %v1159 = vsel %vm1155, %v1153, %v1157
      %v1160 = vsel %vm1156, %v1154, %v1158
      %v1161 = vld [vmem:[%s7] sm:$0xff]
      %v1162 = vld [vmem:[%s7 + $0x8] sm:$0xff]
      %v1164 = vsel %vm513, %v1161, 0
      %v1167 = vsel %vm513, %v1162, 0
      %v1170 = vsel %vm436, %v1159, 0
      %v1173 = vsel %vm436, %v1160, 0
      %1175 = vmatpush.msra.mxu0 0.0
      %1176 = vmatpush.msra.mxu0 0.0
      %1177 = vmatpush.msra.mxu0 0.0
      %1178 = vmatpush.msra.mxu0 0.0
      %1179 = vmatpush.msra.mxu0 0.0
      %1180 = vmatpush.msra.mxu0 0.0
      %1181 = vmatpush.msra.mxu0 0.0
      %1182 = vmatpush.msra.mxu0 0.0
      %1183 = vmatpush.msra.mxu0 0.0
      %1184 = vmatpush.msra.mxu0 0.0
      %1185 = vmatpush.msra.mxu0 0.0
      %1186 = vmatpush.msra.mxu0 0.0
      %1187 = vmatpush.msra.mxu0 0.0
      %1188 = vmatpush.msra.mxu0 0.0
      %1189 = vmatpush.msra.mxu0 0.0
      %1190 = vmatpush.msra.mxu0 %v1170
      %1191 = vmatmul.f32.gmra.mxu0 %v1164
      %v1192 = vpop.f32.mrf.mxu0
      %v1193 = vadd.f32 0.0, %v1192
      %1194 = vmatmul.f32.gmra.mxu0 %v1167
      %v1195 = vpop.f32.mrf.mxu0
      %v1196 = vadd.f32 0.0, %v1195
      %1197 = vdwg.mxu0
      %1198 = vmatpush.msra.mxu0 0.0
      %1199 = vmatpush.msra.mxu0 0.0
      %1200 = vmatpush.msra.mxu0 0.0
      %1201 = vmatpush.msra.mxu0 0.0
      %1202 = vmatpush.msra.mxu0 0.0
      %1203 = vmatpush.msra.mxu0 0.0
      %1204 = vmatpush.msra.mxu0 0.0
      %1205 = vmatpush.msra.mxu0 0.0
      %1206 = vmatpush.msra.mxu0 0.0
      %1207 = vmatpush.msra.mxu0 0.0
      %1208 = vmatpush.msra.mxu0 0.0
      %1209 = vmatpush.msra.mxu0 0.0
      %1210 = vmatpush.msra.mxu0 0.0
      %1211 = vmatpush.msra.mxu0 0.0
      %1212 = vmatpush.msra.mxu0 0.0
      %1213 = vmatpush.msra.mxu0 %v1173
      %1214 = vmatmul.f32.gmra.mxu0 %v1164
      %v1215 = vpop.f32.mrf.mxu0
      %v1216 = vadd.f32 0.0, %v1215
      %1217 = vmatmul.f32.gmra.mxu0 %v1167
      %v1218 = vpop.f32.mrf.mxu0
      %v1219 = vadd.f32 0.0, %v1218
      %1220 = vdwg.mxu0
      %v1221 = vld [vmem:[%s8] sm:$0xff]
      %v1222 = vld [vmem:[%s8 + $0x8] sm:$0xff]
      %1224 = vset.pattern.permute.xlu0 0
      %1225 = vperm.xlu0 %1224, %v1221
      %v1226 = vpop.permute.xlu0 %1225
      %1229 = vset.pattern.permute.xlu0 0
      %1230 = vperm.xlu0 %1229, %v1222
      %v1231 = vpop.permute.xlu0 %1230
      %v1233 = vmul.f32 %v1193, %v1226
      %v1234 = vmul.f32 %v1216, %v1226
      %v1235 = vmul.f32 %v1196, %v1231
      %v1236 = vmul.f32 %v1219, %v1231
      %v1237 = vld [vmem:[%s9] sm:$0xff]
      %v1238 = vld [vmem:[%s9 + $0x8] sm:$0xff]
      %1240 = vset.pattern.permute.xlu0 0
      %1241 = vperm.xlu0 %1240, %v1237
      %v1242 = vpop.permute.xlu0 %1241
      %1245 = vset.pattern.permute.xlu0 0
      %1246 = vperm.xlu0 %1245, %v1238
      %v1247 = vpop.permute.xlu0 %1246
      %v1249 = vadd.f32 %v1233, %v1242
      %v1250 = vadd.f32 %v1234, %v1242
      %v1251 = vadd.f32 %v1235, %v1247
      %v1252 = vadd.f32 %v1236, %v1247
      %v1253 = vadd.f32 %v1249, %v360
      %v1254 = vadd.f32 %v1250, %v361
      %v1255 = vadd.f32 %v1251, %v362
      %v1256 = vadd.f32 %v1252, %v363
      %vm1257 = vcmp.ge.f32.partialorder %v1253, 0.0
      %vm1258 = vcmp.ge.f32.partialorder %v1254, 0.0
      %vm1259 = vcmp.ge.f32.partialorder %v1255, 0.0
      %vm1260 = vcmp.ge.f32.partialorder %v1256, 0.0
      %v1261 = vmul.f32 %v1253, 0.01
      %v1262 = vmul.f32 %v1254, 0.01
      %v1263 = vmul.f32 %v1255, 0.01
      %v1264 = vmul.f32 %v1256, 0.01
      %v1265 = vsel %vm1257, %v1253, %v1261
      %v1266 = vsel %vm1258, %v1254, %v1262
      %v1267 = vsel %vm1259, %v1255, %v1263
      %v1268 = vsel %vm1260, %v1256, %v1264
      %1269 = vst [vmem:[%s359] sm:$0xff] %v1265
      %1270 = vst [vmem:[%s359 + $0x8] sm:$0xff] %v1266
      %1271 = vst [vmem:[%s359 + $0x10] sm:$0xff] %v1267
      %1272 = vst [vmem:[%s359 + $0x18] sm:$0xff] %v1268
      %p1273 = scmp.lt.s32.totalorder %s21, 1
      %s1274 = scalar_select %p1273, %s21, 1
      %s1275 = smul.addr %s1274, 4
      %s1276 = smul.addr %s1275, 8
      %s1277 = scalar_lea.vmem %s10, %s1276
      // Predicated region
      $region61: #{bottleneck_forward.1} parent=59 // pred_check
        %p1278 = pneg %p254
      $region62: #{bottleneck_forward.1} parent=59 // pred_check_branch
        %1280 = sbr.rel (%p1278) target = $region64
      $region63: #{bottleneck_forward.1} parent=59 // pred_region
        _
      $region64: #{bottleneck_forward.1} parent=59 // pred_fallthru
        _
    $region60: #{bottleneck_forward.1} parent=5 // pred_fallthru
      _
    %p1281 = scmp.le.s32.totalorder 2, %s16
    // Predicated region
    $region65: #{bottleneck_forward.1} parent=5 // pred_check
      %p1282 = pneg %p1281
    $region66: #{bottleneck_forward.1} parent=5 // pred_check_branch
      %1284 = sbr.rel (%p1282) target = $region68
    $region67: #{bottleneck_forward.1} parent=5 // pred_region
      %s1285 = ssub.s32 %s16, 2
      // Predicated region
      $region69: #{bottleneck_forward.1} parent=67 // pred_check
        %p1286 = pneg %p260
      $region70: #{bottleneck_forward.1} parent=67 // pred_check_branch
        %1288 = sbr.rel (%p1286) target = $region72
      $region71: #{bottleneck_forward.1} parent=67 // pred_region
        %p1289 = scmp.lt.s32.totalorder %s22, 1
        %s1290 = scalar_select %p1289, %s22, 1
        %s1291 = smul.addr %s1290, 4
        %s1292 = smul.addr %s1291, 8
        %s1293 = scalar_lea.vmem %s10, %s1292
      $region72: #{bottleneck_forward.1} parent=67 // pred_fallthru
        _
    $region68: #{bottleneck_forward.1} parent=5 // pred_fallthru
      _
  $region6: #{bottleneck_forward.1} parent=0 // loop_footer
    %s20 = sadd.s32 1, %s16
  $region7: #{bottleneck_forward.1} parent=0 // loop_footer_branch
    %15 = sbr.rel target = $region3
  $region8: #{bottleneck_forward.1} parent=0 // loop_exit
    _

</llo_original>
